<compile_context>
chip_gen: v5e
topology: v5e:2x2
jax: 0.10.0
libtpu: 0.0.40
codegen_flags: <defaults>
</compile_context>

<pallas_src>
import functools

import numpy as np
import jax
import jax.numpy as jnp
from jax.experimental import pallas as pl
from jax.experimental.pallas import tpu as pltpu

# -----------------------------------------------------------------------------
# Model hyper-parameters (a tiny BERT-like "pretrained_model" stand-in).
# -----------------------------------------------------------------------------
VOCAB = 100
MAX_POS = 32
HIDDEN = 32
NUM_HEADS = 2
HEAD_DIM = HIDDEN // NUM_HEADS
NUM_LAYERS = 2
INTERMEDIATE = 64
NUM_CLASSES = 3
LN_EPS = 1e-12

# -----------------------------------------------------------------------------
# Packed parameter-buffer layout (static offsets, all sublane/lane aligned).
# -----------------------------------------------------------------------------
LANE = 128
VOCAB_PAD = 128                         # tok_emb rows padded to one lane tile
QKV_SLOTS = NUM_HEADS * 3               # (head, {Q,K,V}) slots
QKV_LANES = QKV_SLOTS * LANE            # 768: each slot at a 128-lane boundary

# wmat buffer: (WMAT_ROWS, 128) f32
TOK_OFF = 0
POS_OFF = VOCAB_PAD
_LAYER_MAT_ROWS = HIDDEN + HIDDEN + INTERMEDIATE      # Wo + W1 + W2 = 128 rows


def _wo_off(l):
    return POS_OFF + MAX_POS + l * _LAYER_MAT_ROWS


def _w1_off(l):
    return _wo_off(l) + HIDDEN


def _w2_off(l):
    return _w1_off(l) + HIDDEN


WC_OFF = POS_OFF + MAX_POS + NUM_LAYERS * _LAYER_MAT_ROWS
WMAT_ROWS = WC_OFF + HIDDEN

# vec buffer: (VEC_ROWS, 128) f32, one vector per row (lanes [0:len], rest 0)
EMB_G_ROW = 0
EMB_B_ROW = 1
VEC_PER_LAYER = 13                      # 6 qkv-bias slots, bo, ln1(g,b), b1, b2, ln2(g,b)


def _vbase(l):
    return 2 + l * VEC_PER_LAYER


BC_ROW = 2 + NUM_LAYERS * VEC_PER_LAYER
VEC_ROWS = ((BC_ROW + 1 + 7) // 8) * 8


# -----------------------------------------------------------------------------
# Fused forward kernel
# -----------------------------------------------------------------------------
def _layernorm(x, g, b, eps=LN_EPS):
    # Single pass: mean and mean(x*x) are independent lane reductions.
    mu = jnp.mean(x, axis=-1, keepdims=True)
    ms = jnp.mean(x * x, axis=-1, keepdims=True)
    var = jnp.maximum(ms - mu * mu, 0.0)
    return (x - mu) * jax.lax.rsqrt(var + eps) * g + b


def _fused_forward_kernel(ids_ref, mask_ref, wqkv_ref, wmat_ref, vec_ref,
                          out_ref, *, batch, seq):
    bs = batch * seq

    # ---- token embedding gather as a one-hot MXU matmul (in-kernel) --------
    ids = ids_ref[...]                                            # (BS, 1) i32
    lane_iota = jax.lax.broadcasted_iota(jnp.int32, (bs, VOCAB_PAD), 1)
    onehot = (lane_iota == ids).astype(jnp.float32)               # (BS, 128)
    tok = jnp.dot(onehot, wmat_ref[TOK_OFF:TOK_OFF + VOCAB_PAD, :HIDDEN],
                  preferred_element_type=jnp.float32)             # (BS, H)

    # positional embedding add (tiled across batch) + embedding LayerNorm
    pos = wmat_ref[POS_OFF:POS_OFF + seq, :HIDDEN]                # (S, H)
    h = tok + jnp.concatenate([pos] * batch, axis=0)              # (BS, H)
    h = _layernorm(h, vec_ref[EMB_G_ROW:EMB_G_ROW + 1, :HIDDEN],
                   vec_ref[EMB_B_ROW:EMB_B_ROW + 1, :HIDDEN])

    # ---- additive key mask, broadcast ONCE (hoisted out of all loops) ------
    maskf = mask_ref[...].astype(jnp.float32)                     # (B, S)
    neg = (1.0 - maskf) * jnp.float32(-1e9)
    mask_bss = jnp.broadcast_to(neg[:, None, :], (batch, seq, seq))

    for l in range(NUM_LAYERS):                                   # static unroll
        vb = _vbase(l)
        r0 = l * HIDDEN

        # Fused QKV projection; 1/sqrt(head_dim) already folded into Q columns.
        # Each (head, Q/K/V) block sits at its own 128-lane slot -> all slices
        # below start at a vreg boundary.
        qkv = jnp.dot(h, wqkv_ref[r0:r0 + HIDDEN, :],
                      preferred_element_type=jnp.float32)         # (BS, 768)

        ctx = []
        for hh in range(NUM_HEADS):                                # static unroll
            sq = (hh * 3 + 0) * LANE
            sk = (hh * 3 + 1) * LANE
            sv = (hh * 3 + 2) * LANE
            br = vb + hh * 3
            q = (qkv[:, sq:sq + HEAD_DIM]
                 + vec_ref[br:br + 1, :HEAD_DIM]).reshape(batch, seq, HEAD_DIM)
            k = (qkv[:, sk:sk + HEAD_DIM]
                 + vec_ref[br + 1:br + 2, :HEAD_DIM]).reshape(batch, seq, HEAD_DIM)
            v = (qkv[:, sv:sv + HEAD_DIM]
                 + vec_ref[br + 2:br + 3, :HEAD_DIM]).reshape(batch, seq, HEAD_DIM)

            s = jnp.einsum("bqd,bkd->bqk", q, k,
                           preferred_element_type=jnp.float32)    # (B, S, S)
            s = s + mask_bss
            s = s - jnp.max(s, axis=-1, keepdims=True)
            p = jnp.exp(s)
            denom = jnp.sum(p, axis=-1, keepdims=True)
            p = p * pl.reciprocal(denom, approx=True)              # EUP slot
            o = jnp.einsum("bqk,bkd->bqd", p, v,
                           preferred_element_type=jnp.float32)
            ctx.append(o.reshape(bs, HEAD_DIM))

        # Output projection: ctx @ Wo == sum_h ctx_h @ Wo[h*hd:(h+1)*hd]
        # (Wo row slices are sublane-aligned; no zeros-init accumulator.)
        wo0 = _wo_off(l)
        attn = jnp.dot(ctx[0], wmat_ref[wo0:wo0 + HEAD_DIM, :HIDDEN],
                       preferred_element_type=jnp.float32)
        for hh in range(1, NUM_HEADS):
            attn = attn + jnp.dot(
                ctx[hh],
                wmat_ref[wo0 + hh * HEAD_DIM:wo0 + (hh + 1) * HEAD_DIM, :HIDDEN],
                preferred_element_type=jnp.float32)
        attn = attn + vec_ref[vb + 6:vb + 7, :HIDDEN]

        h = _layernorm(attn + h, vec_ref[vb + 7:vb + 8, :HIDDEN],
                       vec_ref[vb + 8:vb + 9, :HIDDEN])

        # ---- feed-forward block --------------------------------------------
        w1o, w2o = _w1_off(l), _w2_off(l)
        f = (jnp.dot(h, wmat_ref[w1o:w1o + HIDDEN, :INTERMEDIATE],
                     preferred_element_type=jnp.float32)
             + vec_ref[vb + 9:vb + 10, :INTERMEDIATE])
        # TODO(synk): use exact erf GELU (approximate=False) to match
        # torch.nn.GELU bit-exactly once erf lowering is guaranteed in Mosaic.
        f = jax.nn.gelu(f)
        f = (jnp.dot(f, wmat_ref[w2o:w2o + INTERMEDIATE, :HIDDEN],
                     preferred_element_type=jnp.float32)
             + vec_ref[vb + 10:vb + 11, :HIDDEN])
        h = _layernorm(f + h, vec_ref[vb + 11:vb + 12, :HIDDEN],
                       vec_ref[vb + 12:vb + 13, :HIDDEN])

    # ---- CLS pooling + dropout (identity at inference) + classifier --------
    cls = h.reshape(batch, seq, HIDDEN)[:, 0, :]                  # (B, H)
    logits = (jnp.dot(cls, wmat_ref[WC_OFF:WC_OFF + HIDDEN, :],
                      preferred_element_type=jnp.float32)
              + vec_ref[BC_ROW:BC_ROW + 1, :])                    # (B, 128)
    out_ref[...] = logits.astype(out_ref.dtype)                   # lane-dense store


# -----------------------------------------------------------------------------
# Parameter initialization + packing (deterministic synthetic "pretrained").
# -----------------------------------------------------------------------------
def init_params(key):
    def nrm(k, shape, std=0.02):
        return np.asarray(std * jax.random.normal(k, shape, dtype=jnp.float32))

    keys = iter(jax.random.split(key, 3 + NUM_LAYERS * 6))
    scale = 1.0 / float(HEAD_DIM) ** 0.5

    wqkv = np.zeros((NUM_LAYERS * HIDDEN, QKV_LANES), np.float32)
    wmat = np.zeros((WMAT_ROWS, LANE), np.float32)
    vec = np.zeros((VEC_ROWS, LANE), np.float32)

    # Embeddings + embedding LayerNorm (gamma=1, beta=0).
    wmat[TOK_OFF:TOK_OFF + VOCAB, :HIDDEN] = nrm(next(keys), (VOCAB, HIDDEN))
    wmat[POS_OFF:POS_OFF + MAX_POS, :HIDDEN] = nrm(next(keys), (MAX_POS, HIDDEN))
    vec[EMB_G_ROW, :HIDDEN] = 1.0

    # Classifier head (bias row stays 0; padded columns stay 0 so the padded
    # logits are zero beyond NUM_CLASSES).
    wmat[WC_OFF:WC_OFF + HIDDEN, :NUM_CLASSES] = nrm(
        next(keys), (HIDDEN, NUM_CLASSES))

    for l in range(NUM_LAYERS):
        wq = nrm(next(keys), (HIDDEN, HIDDEN))
        wk = nrm(next(keys), (HIDDEN, HIDDEN))
        wv = nrm(next(keys), (HIDDEN, HIDDEN))
        wo = nrm(next(keys), (HIDDEN, HIDDEN))
        w1 = nrm(next(keys), (HIDDEN, INTERMEDIATE))
        w2 = nrm(next(keys), (INTERMEDIATE, HIDDEN))

        r0 = l * HIDDEN
        for hh in range(NUM_HEADS):
            c0 = hh * HEAD_DIM
            # Q block: fold 1/sqrt(head_dim) into the weights (biases are 0).
            wqkv[r0:r0 + HIDDEN,
                 (hh * 3 + 0) * LANE:(hh * 3 + 0) * LANE + HEAD_DIM] = (
                     wq[:, c0:c0 + HEAD_DIM] * scale)
            wqkv[r0:r0 + HIDDEN,
                 (hh * 3 + 1) * LANE:(hh * 3 + 1) * LANE + HEAD_DIM] = (
                     wk[:, c0:c0 + HEAD_DIM])
            wqkv[r0:r0 + HIDDEN,
                 (hh * 3 + 2) * LANE:(hh * 3 + 2) * LANE + HEAD_DIM] = (
                     wv[:, c0:c0 + HEAD_DIM])

        wmat[_wo_off(l):_wo_off(l) + HIDDEN, :HIDDEN] = wo
        wmat[_w1_off(l):_w1_off(l) + HIDDEN, :INTERMEDIATE] = w1
        wmat[_w2_off(l):_w2_off(l) + INTERMEDIATE, :HIDDEN] = w2

        vb = _vbase(l)
        vec[vb + 7, :HIDDEN] = 1.0      # LN1 gamma
        vec[vb + 11, :HIDDEN] = 1.0     # LN2 gamma
        # All biases (qkv / bo / b1 / b2) and LN betas stay zero.

    return {"wqkv": jnp.asarray(wqkv),
            "wmat": jnp.asarray(wmat),
            "vec": jnp.asarray(vec)}


# -----------------------------------------------------------------------------
# Forward pass: ONE fused Pallas kernel (5 inputs, no grid).
# -----------------------------------------------------------------------------
def amr_classifier_forward(params, input_ids, attention_mask):
    B, S = input_ids.shape
    assert S <= MAX_POS, "sequence length exceeds positional embedding table"

    ids2d = input_ids.reshape(B * S, 1).astype(jnp.int32)     # trivial reshape
    mask2d = attention_mask.astype(jnp.int32)                 # (B, S)

    kernel = functools.partial(_fused_forward_kernel, batch=B, seq=S)
    vmem = pl.BlockSpec(memory_space=pltpu.MemorySpace.VMEM)

    padded_logits = pl.pallas_call(
        kernel,
        out_shape=jax.ShapeDtypeStruct((B, LANE), jnp.float32),
        in_specs=[vmem] * 5,
        out_specs=vmem,
    )(ids2d, mask2d, params["wqkv"], params["wmat"], params["vec"])
    return padded_logits[:, :NUM_CLASSES]


# -----------------------------------------------------------------------------
if __name__ == "__main__":
    key = jax.random.PRNGKey(0)
    pkey, ikey = jax.random.split(key)

    params = init_params(pkey)

    B, S = 2, 8
    input_ids = jax.random.randint(ikey, (B, S), 0, VOCAB, dtype=jnp.int32)
    attention_mask = jnp.array(
        [[1, 1, 1, 1, 1, 1, 1, 1],
         [1, 1, 1, 1, 1, 0, 0, 0]], dtype=jnp.int32)

    fwd = jax.jit(amr_classifier_forward)
    logits = jax.block_until_ready(fwd(params, input_ids, attention_mask))
    assert logits.shape == (B, NUM_CLASSES)
    assert bool(jnp.all(jnp.isfinite(logits)))
    print("KERNEL_OK")
</pallas_src>

<mosaic_0001>
module attributes {stable_mosaic.version = 11 : i64} {
  func.func @_fused_forward_kernel(%arg0: memref<16x1xi32, #tpu.memory_space<vmem>>, %arg1: memref<2x8xi32, #tpu.memory_space<vmem>>, %arg2: memref<64x768xf32, #tpu.memory_space<vmem>>, %arg3: memref<448x128xf32, #tpu.memory_space<vmem>>, %arg4: memref<32x128xf32, #tpu.memory_space<vmem>>, %arg5: memref<2x128xf32, #tpu.memory_space<vmem>>) attributes {dimension_semantics = [], scalar_prefetch = 0 : i64, scratch_operands = 0 : i64, tpu.core_type = #tpu.core_type<tc>} {
    %c0 = arith.constant 0 : index
    %c0_0 = arith.constant 0 : index
    %0 = vector.load %arg0[%c0, %c0_0] : memref<16x1xi32, #tpu.memory_space<vmem>>, vector<16x1xi32>
    %1 = tpu.iota {dimensions = array<i32: 1>} : vector<16x128xi32>
    %2 = vector.broadcast %0 : vector<16x1xi32> to vector<16x128xi32>
    %3 = arith.cmpi eq, %1, %2 : vector<16x128xi32>
    %4 = arith.extui %3 : vector<16x128xi1> to vector<16x128xi32>
    %5 = arith.sitofp %4 : vector<16x128xi32> to vector<16x128xf32>
    %c0_1 = arith.constant 0 : index
    %c0_2 = arith.constant 0 : index
    %6 = vector.load %arg3[%c0_1, %c0_2] : memref<448x128xf32, #tpu.memory_space<vmem>>, vector<128x32xf32>
    %cst = arith.constant dense<0.000000e+00> : vector<16x32xf32>
    %7 = tpu.matmul %5, %6, %cst {dimension_numbers = #tpu.dot_dimension_numbers<[1], [0], [0], [1], [0, 0, 1, 1], [], []>} : vector<16x128xf32>, vector<128x32xf32>, vector<16x32xf32> -> vector<16x32xf32>
    %c128 = arith.constant 128 : index
    %c0_3 = arith.constant 0 : index
    %8 = vector.load %arg3[%c128, %c0_3] : memref<448x128xf32, #tpu.memory_space<vmem>>, vector<8x32xf32>
    %9 = tpu.concatenate %8, %8 in 0 : vector<8x32xf32>, vector<8x32xf32> -> vector<16x32xf32>
    %10 = arith.addf %7, %9 : vector<16x32xf32>
    %c0_4 = arith.constant 0 : index
    %c0_5 = arith.constant 0 : index
    %11 = vector.load %arg4[%c0_4, %c0_5] : memref<32x128xf32, #tpu.memory_space<vmem>>, vector<1x32xf32>
    %c1 = arith.constant 1 : index
    %c0_6 = arith.constant 0 : index
    %12 = vector.load %arg4[%c1, %c0_6] : memref<32x128xf32, #tpu.memory_space<vmem>>, vector<1x32xf32>
    %cst_7 = arith.constant dense<0.000000e+00> : vector<16xf32>
    %13 = vector.multi_reduction <add>, %10, %cst_7 [1] : vector<16x32xf32> to vector<16xf32>
    %14 = vector.shape_cast %13 : vector<16xf32> to vector<16x1xf32>
    %cst_8 = arith.constant 3.200000e+01 : f32
    %15 = vector.broadcast %cst_8 : f32 to vector<16x1xf32>
    %16 = arith.divf %14, %15 : vector<16x1xf32>
    %17 = arith.mulf %10, %10 : vector<16x32xf32>
    %cst_9 = arith.constant dense<0.000000e+00> : vector<16xf32>
    %18 = vector.multi_reduction <add>, %17, %cst_9 [1] : vector<16x32xf32> to vector<16xf32>
    %19 = vector.shape_cast %18 : vector<16xf32> to vector<16x1xf32>
    %cst_10 = arith.constant 3.200000e+01 : f32
    %20 = vector.broadcast %cst_10 : f32 to vector<16x1xf32>
    %21 = arith.divf %19, %20 : vector<16x1xf32>
    %22 = arith.mulf %16, %16 : vector<16x1xf32>
    %23 = arith.subf %21, %22 : vector<16x1xf32>
    %cst_11 = arith.constant 0.000000e+00 : f32
    %24 = vector.broadcast %cst_11 : f32 to vector<16x1xf32>
    %25 = arith.maximumf %23, %24 : vector<16x1xf32>
    %26 = vector.broadcast %16 : vector<16x1xf32> to vector<16x32xf32>
    %27 = arith.subf %10, %26 : vector<16x32xf32>
    %cst_12 = arith.constant 9.99999996E-13 : f32
    %28 = vector.broadcast %cst_12 : f32 to vector<16x1xf32>
    %29 = arith.addf %25, %28 : vector<16x1xf32>
    %30 = math.rsqrt %29 : vector<16x1xf32>
    %31 = vector.broadcast %30 : vector<16x1xf32> to vector<16x32xf32>
    %32 = arith.mulf %27, %31 : vector<16x32xf32>
    %33 = vector.broadcast %11 : vector<1x32xf32> to vector<16x32xf32>
    %34 = arith.mulf %32, %33 : vector<16x32xf32>
    %35 = vector.broadcast %12 : vector<1x32xf32> to vector<16x32xf32>
    %36 = arith.addf %34, %35 : vector<16x32xf32>
    %c0_13 = arith.constant 0 : index
    %c0_14 = arith.constant 0 : index
    %37 = vector.load %arg1[%c0_13, %c0_14] : memref<2x8xi32, #tpu.memory_space<vmem>>, vector<2x8xi32>
    %38 = arith.sitofp %37 : vector<2x8xi32> to vector<2x8xf32>
    %cst_15 = arith.constant 1.000000e+00 : f32
    %39 = vector.broadcast %cst_15 : f32 to vector<2x8xf32>
    %40 = arith.subf %39, %38 : vector<2x8xf32>
    %cst_16 = arith.constant -1.000000e+09 : f32
    %41 = vector.broadcast %cst_16 : f32 to vector<2x8xf32>
    %42 = arith.mulf %40, %41 : vector<2x8xf32>
    %43 = vector.shape_cast %42 : vector<2x8xf32> to vector<2x1x8xf32>
    %44 = vector.shape_cast %43 : vector<2x1x8xf32> to vector<2x1x8xf32>
    %45 = vector.broadcast %44 : vector<2x1x8xf32> to vector<2x8x8xf32>
    %c0_17 = arith.constant 0 : index
    %c0_18 = arith.constant 0 : index
    %46 = vector.load %arg2[%c0_17, %c0_18] : memref<64x768xf32, #tpu.memory_space<vmem>>, vector<32x768xf32>
    %cst_19 = arith.constant dense<0.000000e+00> : vector<16x768xf32>
    %47 = tpu.matmul %36, %46, %cst_19 {dimension_numbers = #tpu.dot_dimension_numbers<[1], [0], [0], [1], [0, 0, 1, 1], [], []>} : vector<16x32xf32>, vector<32x768xf32>, vector<16x768xf32> -> vector<16x768xf32>
    %48 = vector.extract_strided_slice %47 {offsets = [0, 0], sizes = [16, 16], strides = [1, 1]} : vector<16x768xf32> to vector<16x16xf32>
    %c2 = arith.constant 2 : index
    %c0_20 = arith.constant 0 : index
    %49 = vector.load %arg4[%c2, %c0_20] : memref<32x128xf32, #tpu.memory_space<vmem>>, vector<1x16xf32>
    %50 = vector.broadcast %49 : vector<1x16xf32> to vector<16x16xf32>
    %51 = arith.addf %48, %50 : vector<16x16xf32>
    %52 = vector.shape_cast %51 : vector<16x16xf32> to vector<2x8x16xf32>
    %53 = vector.extract_strided_slice %47 {offsets = [0, 128], sizes = [16, 16], strides = [1, 1]} : vector<16x768xf32> to vector<16x16xf32>
    %c3 = arith.constant 3 : index
    %c0_21 = arith.constant 0 : index
    %54 = vector.load %arg4[%c3, %c0_21] : memref<32x128xf32, #tpu.memory_space<vmem>>, vector<1x16xf32>
    %55 = vector.broadcast %54 : vector<1x16xf32> to vector<16x16xf32>
    %56 = arith.addf %53, %55 : vector<16x16xf32>
    %57 = vector.shape_cast %56 : vector<16x16xf32> to vector<2x8x16xf32>
    %58 = vector.extract_strided_slice %47 {offsets = [0, 256], sizes = [16, 16], strides = [1, 1]} : vector<16x768xf32> to vector<16x16xf32>
    %c4 = arith.constant 4 : index
    %c0_22 = arith.constant 0 : index
    %59 = vector.load %arg4[%c4, %c0_22] : memref<32x128xf32, #tpu.memory_space<vmem>>, vector<1x16xf32>
    %60 = vector.broadcast %59 : vector<1x16xf32> to vector<16x16xf32>
    %61 = arith.addf %58, %60 : vector<16x16xf32>
    %62 = vector.shape_cast %61 : vector<16x16xf32> to vector<2x8x16xf32>
    "tpu.trace_start"() <{level = 10 : i32, message = "bqd,bkd->bqk"}> : () -> ()
    %cst_23 = arith.constant dense<0.000000e+00> : vector<2x8x8xf32>
    %63 = tpu.matmul %52, %57, %cst_23 {dimension_numbers = #tpu.dot_dimension_numbers<[2], [2], [1], [1], [0, 0, 0, 1, 1, 1], [0], [0]>} : vector<2x8x16xf32>, vector<2x8x16xf32>, vector<2x8x8xf32> -> vector<2x8x8xf32>
    "tpu.trace_stop"() : () -> ()
    %64 = arith.addf %63, %45 : vector<2x8x8xf32>
    %cst_24 = arith.constant dense<0xFF800000> : vector<2x8xf32>
    %65 = vector.multi_reduction <maximumf>, %64, %cst_24 [2] : vector<2x8x8xf32> to vector<2x8xf32>
    %66 = vector.shape_cast %65 : vector<2x8xf32> to vector<2x8x1xf32>
    %67 = vector.broadcast %66 : vector<2x8x1xf32> to vector<2x8x8xf32>
    %68 = arith.subf %64, %67 : vector<2x8x8xf32>
    %69 = math.exp %68 : vector<2x8x8xf32>
    %cst_25 = arith.constant dense<0.000000e+00> : vector<2x8xf32>
    %70 = vector.multi_reduction <add>, %69, %cst_25 [2] : vector<2x8x8xf32> to vector<2x8xf32>
    %71 = vector.shape_cast %70 : vector<2x8xf32> to vector<2x8x1xf32>
    %72 = tpu.reciprocal %71 {approx = true} : vector<2x8x1xf32> -> vector<2x8x1xf32>
    %73 = vector.broadcast %72 : vector<2x8x1xf32> to vector<2x8x8xf32>
    %74 = arith.mulf %69, %73 : vector<2x8x8xf32>
    "tpu.trace_start"() <{level = 10 : i32, message = "bqk,bkd->bqd"}> : () -> ()
    %cst_26 = arith.constant dense<0.000000e+00> : vector<2x8x16xf32>
    %75 = tpu.matmul %74, %62, %cst_26 {dimension_numbers = #tpu.dot_dimension_numbers<[2], [1], [1], [2], [0, 0, 0, 1, 1, 2], [0], [0]>} : vector<2x8x8xf32>, vector<2x8x16xf32>, vector<2x8x16xf32> -> vector<2x8x16xf32>
    "tpu.trace_stop"() : () -> ()
    %76 = vector.shape_cast %75 : vector<2x8x16xf32> to vector<16x16xf32>
    %77 = vector.extract_strided_slice %47 {offsets = [0, 384], sizes = [16, 16], strides = [1, 1]} : vector<16x768xf32> to vector<16x16xf32>
    %c5 = arith.constant 5 : index
    %c0_27 = arith.constant 0 : index
    %78 = vector.load %arg4[%c5, %c0_27] : memref<32x128xf32, #tpu.memory_space<vmem>>, vector<1x16xf32>
    %79 = vector.broadcast %78 : vector<1x16xf32> to vector<16x16xf32>
    %80 = arith.addf %77, %79 : vector<16x16xf32>
    %81 = vector.shape_cast %80 : vector<16x16xf32> to vector<2x8x16xf32>
    %82 = vector.extract_strided_slice %47 {offsets = [0, 512], sizes = [16, 16], strides = [1, 1]} : vector<16x768xf32> to vector<16x16xf32>
    %c6 = arith.constant 6 : index
    %c0_28 = arith.constant 0 : index
    %83 = vector.load %arg4[%c6, %c0_28] : memref<32x128xf32, #tpu.memory_space<vmem>>, vector<1x16xf32>
    %84 = vector.broadcast %83 : vector<1x16xf32> to vector<16x16xf32>
    %85 = arith.addf %82, %84 : vector<16x16xf32>
    %86 = vector.shape_cast %85 : vector<16x16xf32> to vector<2x8x16xf32>
    %87 = vector.extract_strided_slice %47 {offsets = [0, 640], sizes = [16, 16], strides = [1, 1]} : vector<16x768xf32> to vector<16x16xf32>
    %c7 = arith.constant 7 : index
    %c0_29 = arith.constant 0 : index
    %88 = vector.load %arg4[%c7, %c0_29] : memref<32x128xf32, #tpu.memory_space<vmem>>, vector<1x16xf32>
    %89 = vector.broadcast %88 : vector<1x16xf32> to vector<16x16xf32>
    %90 = arith.addf %87, %89 : vector<16x16xf32>
    %91 = vector.shape_cast %90 : vector<16x16xf32> to vector<2x8x16xf32>
    "tpu.trace_start"() <{level = 10 : i32, message = "bqd,bkd->bqk"}> : () -> ()
    %cst_30 = arith.constant dense<0.000000e+00> : vector<2x8x8xf32>
    %92 = tpu.matmul %81, %86, %cst_30 {dimension_numbers = #tpu.dot_dimension_numbers<[2], [2], [1], [1], [0, 0, 0, 1, 1, 1], [0], [0]>} : vector<2x8x16xf32>, vector<2x8x16xf32>, vector<2x8x8xf32> -> vector<2x8x8xf32>
    "tpu.trace_stop"() : () -> ()
    %93 = arith.addf %92, %45 : vector<2x8x8xf32>
    %cst_31 = arith.constant dense<0xFF800000> : vector<2x8xf32>
    %94 = vector.multi_reduction <maximumf>, %93, %cst_31 [2] : vector<2x8x8xf32> to vector<2x8xf32>
    %95 = vector.shape_cast %94 : vector<2x8xf32> to vector<2x8x1xf32>
    %96 = vector.broadcast %95 : vector<2x8x1xf32> to vector<2x8x8xf32>
    %97 = arith.subf %93, %96 : vector<2x8x8xf32>
    %98 = math.exp %97 : vector<2x8x8xf32>
    %cst_32 = arith.constant dense<0.000000e+00> : vector<2x8xf32>
    %99 = vector.multi_reduction <add>, %98, %cst_32 [2] : vector<2x8x8xf32> to vector<2x8xf32>
    %100 = vector.shape_cast %99 : vector<2x8xf32> to vector<2x8x1xf32>
    %101 = tpu.reciprocal %100 {approx = true} : vector<2x8x1xf32> -> vector<2x8x1xf32>
    %102 = vector.broadcast %101 : vector<2x8x1xf32> to vector<2x8x8xf32>
    %103 = arith.mulf %98, %102 : vector<2x8x8xf32>
    "tpu.trace_start"() <{level = 10 : i32, message = "bqk,bkd->bqd"}> : () -> ()
    %cst_33 = arith.constant dense<0.000000e+00> : vector<2x8x16xf32>
    %104 = tpu.matmul %103, %91, %cst_33 {dimension_numbers = #tpu.dot_dimension_numbers<[2], [1], [1], [2], [0, 0, 0, 1, 1, 2], [0], [0]>} : vector<2x8x8xf32>, vector<2x8x16xf32>, vector<2x8x16xf32> -> vector<2x8x16xf32>
    "tpu.trace_stop"() : () -> ()
    %105 = vector.shape_cast %104 : vector<2x8x16xf32> to vector<16x16xf32>
    %c160 = arith.constant 160 : index
    %c0_34 = arith.constant 0 : index
    %106 = vector.load %arg3[%c160, %c0_34] : memref<448x128xf32, #tpu.memory_space<vmem>>, vector<16x32xf32>
    %cst_35 = arith.constant dense<0.000000e+00> : vector<16x32xf32>
    %107 = tpu.matmul %76, %106, %cst_35 {dimension_numbers = #tpu.dot_dimension_numbers<[1], [0], [0], [1], [0, 0, 1, 1], [], []>} : vector<16x16xf32>, vector<16x32xf32>, vector<16x32xf32> -> vector<16x32xf32>
    %c176 = arith.constant 176 : index
    %c0_36 = arith.constant 0 : index
    %108 = vector.load %arg3[%c176, %c0_36] : memref<448x128xf32, #tpu.memory_space<vmem>>, vector<16x32xf32>
    %cst_37 = arith.constant dense<0.000000e+00> : vector<16x32xf32>
    %109 = tpu.matmul %105, %108, %cst_37 {dimension_numbers = #tpu.dot_dimension_numbers<[1], [0], [0], [1], [0, 0, 1, 1], [], []>} : vector<16x16xf32>, vector<16x32xf32>, vector<16x32xf32> -> vector<16x32xf32>
    %110 = arith.addf %107, %109 : vector<16x32xf32>
    %c8 = arith.constant 8 : index
    %c0_38 = arith.constant 0 : index
    %111 = vector.load %arg4[%c8, %c0_38] : memref<32x128xf32, #tpu.memory_space<vmem>>, vector<1x32xf32>
    %112 = vector.broadcast %111 : vector<1x32xf32> to vector<16x32xf32>
    %113 = arith.addf %110, %112 : vector<16x32xf32>
    %114 = arith.addf %113, %36 : vector<16x32xf32>
    %c9 = arith.constant 9 : index
    %c0_39 = arith.constant 0 : index
    %115 = vector.load %arg4[%c9, %c0_39] : memref<32x128xf32, #tpu.memory_space<vmem>>, vector<1x32xf32>
    %c10 = arith.constant 10 : index
    %c0_40 = arith.constant 0 : index
    %116 = vector.load %arg4[%c10, %c0_40] : memref<32x128xf32, #tpu.memory_space<vmem>>, vector<1x32xf32>
    %cst_41 = arith.constant dense<0.000000e+00> : vector<16xf32>
    %117 = vector.multi_reduction <add>, %114, %cst_41 [1] : vector<16x32xf32> to vector<16xf32>
    %118 = vector.shape_cast %117 : vector<16xf32> to vector<16x1xf32>
    %cst_42 = arith.constant 3.200000e+01 : f32
    %119 = vector.broadcast %cst_42 : f32 to vector<16x1xf32>
    %120 = arith.divf %118, %119 : vector<16x1xf32>
    %121 = arith.mulf %114, %114 : vector<16x32xf32>
    %cst_43 = arith.constant dense<0.000000e+00> : vector<16xf32>
    %122 = vector.multi_reduction <add>, %121, %cst_43 [1] : vector<16x32xf32> to vector<16xf32>
    %123 = vector.shape_cast %122 : vector<16xf32> to vector<16x1xf32>
    %cst_44 = arith.constant 3.200000e+01 : f32
    %124 = vector.broadcast %cst_44 : f32 to vector<16x1xf32>
    %125 = arith.divf %123, %124 : vector<16x1xf32>
    %126 = arith.mulf %120, %120 : vector<16x1xf32>
    %127 = arith.subf %125, %126 : vector<16x1xf32>
    %cst_45 = arith.constant 0.000000e+00 : f32
    %128 = vector.broadcast %cst_45 : f32 to vector<16x1xf32>
    %129 = arith.maximumf %127, %128 : vector<16x1xf32>
    %130 = vector.broadcast %120 : vector<16x1xf32> to vector<16x32xf32>
    %131 = arith.subf %114, %130 : vector<16x32xf32>
    %cst_46 = arith.constant 9.99999996E-13 : f32
    %132 = vector.broadcast %cst_46 : f32 to vector<16x1xf32>
    %133 = arith.addf %129, %132 : vector<16x1xf32>
    %134 = math.rsqrt %133 : vector<16x1xf32>
    %135 = vector.broadcast %134 : vector<16x1xf32> to vector<16x32xf32>
    %136 = arith.mulf %131, %135 : vector<16x32xf32>
    %137 = vector.broadcast %115 : vector<1x32xf32> to vector<16x32xf32>
    %138 = arith.mulf %136, %137 : vector<16x32xf32>
    %139 = vector.broadcast %116 : vector<1x32xf32> to vector<16x32xf32>
    %140 = arith.addf %138, %139 : vector<16x32xf32>
    %c192 = arith.constant 192 : index
    %c0_47 = arith.constant 0 : index
    %141 = vector.load %arg3[%c192, %c0_47] : memref<448x128xf32, #tpu.memory_space<vmem>>, vector<32x64xf32>
    %cst_48 = arith.constant dense<0.000000e+00> : vector<16x64xf32>
    %142 = tpu.matmul %140, %141, %cst_48 {dimension_numbers = #tpu.dot_dimension_numbers<[1], [0], [0], [1], [0, 0, 1, 1], [], []>} : vector<16x32xf32>, vector<32x64xf32>, vector<16x64xf32> -> vector<16x64xf32>
    %c11 = arith.constant 11 : index
    %c0_49 = arith.constant 0 : index
    %143 = vector.load %arg4[%c11, %c0_49] : memref<32x128xf32, #tpu.memory_space<vmem>>, vector<1x64xf32>
    %144 = vector.broadcast %143 : vector<1x64xf32> to vector<16x64xf32>
    %145 = arith.addf %142, %144 : vector<16x64xf32>
    %146 = arith.mulf %145, %145 : vector<16x64xf32>
    %147 = arith.mulf %145, %146 : vector<16x64xf32>
    %cst_50 = arith.constant 4.471500e-02 : f32
    %148 = vector.broadcast %cst_50 : f32 to vector<16x64xf32>
    %149 = arith.mulf %148, %147 : vector<16x64xf32>
    %150 = arith.addf %145, %149 : vector<16x64xf32>
    %cst_51 = arith.constant 0.797884583 : f32
    %151 = vector.broadcast %cst_51 : f32 to vector<16x64xf32>
    %152 = arith.mulf %151, %150 : vector<16x64xf32>
    %153 = math.tanh %152 : vector<16x64xf32>
    %cst_52 = arith.constant 1.000000e+00 : f32
    %154 = vector.broadcast %cst_52 : f32 to vector<16x64xf32>
    %155 = arith.addf %154, %153 : vector<16x64xf32>
    %cst_53 = arith.constant 5.000000e-01 : f32
    %156 = vector.broadcast %cst_53 : f32 to vector<16x64xf32>
    %157 = arith.mulf %156, %155 : vector<16x64xf32>
    %158 = arith.mulf %145, %157 : vector<16x64xf32>
    %c224 = arith.constant 224 : index
    %c0_54 = arith.constant 0 : index
    %159 = vector.load %arg3[%c224, %c0_54] : memref<448x128xf32, #tpu.memory_space<vmem>>, vector<64x32xf32>
    %cst_55 = arith.constant dense<0.000000e+00> : vector<16x32xf32>
    %160 = tpu.matmul %158, %159, %cst_55 {dimension_numbers = #tpu.dot_dimension_numbers<[1], [0], [0], [1], [0, 0, 1, 1], [], []>} : vector<16x64xf32>, vector<64x32xf32>, vector<16x32xf32> -> vector<16x32xf32>
    %c12 = arith.constant 12 : index
    %c0_56 = arith.constant 0 : index
    %161 = vector.load %arg4[%c12, %c0_56] : memref<32x128xf32, #tpu.memory_space<vmem>>, vector<1x32xf32>
    %162 = vector.broadcast %161 : vector<1x32xf32> to vector<16x32xf32>
    %163 = arith.addf %160, %162 : vector<16x32xf32>
    %164 = arith.addf %163, %140 : vector<16x32xf32>
    %c13 = arith.constant 13 : index
    %c0_57 = arith.constant 0 : index
    %165 = vector.load %arg4[%c13, %c0_57] : memref<32x128xf32, #tpu.memory_space<vmem>>, vector<1x32xf32>
    %c14 = arith.constant 14 : index
    %c0_58 = arith.constant 0 : index
    %166 = vector.load %arg4[%c14, %c0_58] : memref<32x128xf32, #tpu.memory_space<vmem>>, vector<1x32xf32>
    %cst_59 = arith.constant dense<0.000000e+00> : vector<16xf32>
    %167 = vector.multi_reduction <add>, %164, %cst_59 [1] : vector<16x32xf32> to vector<16xf32>
    %168 = vector.shape_cast %167 : vector<16xf32> to vector<16x1xf32>
    %cst_60 = arith.constant 3.200000e+01 : f32
    %169 = vector.broadcast %cst_60 : f32 to vector<16x1xf32>
    %170 = arith.divf %168, %169 : vector<16x1xf32>
    %171 = arith.mulf %164, %164 : vector<16x32xf32>
    %cst_61 = arith.constant dense<0.000000e+00> : vector<16xf32>
    %172 = vector.multi_reduction <add>, %171, %cst_61 [1] : vector<16x32xf32> to vector<16xf32>
    %173 = vector.shape_cast %172 : vector<16xf32> to vector<16x1xf32>
    %cst_62 = arith.constant 3.200000e+01 : f32
    %174 = vector.broadcast %cst_62 : f32 to vector<16x1xf32>
    %175 = arith.divf %173, %174 : vector<16x1xf32>
    %176 = arith.mulf %170, %170 : vector<16x1xf32>
    %177 = arith.subf %175, %176 : vector<16x1xf32>
    %cst_63 = arith.constant 0.000000e+00 : f32
    %178 = vector.broadcast %cst_63 : f32 to vector<16x1xf32>
    %179 = arith.maximumf %177, %178 : vector<16x1xf32>
    %180 = vector.broadcast %170 : vector<16x1xf32> to vector<16x32xf32>
    %181 = arith.subf %164, %180 : vector<16x32xf32>
    %cst_64 = arith.constant 9.99999996E-13 : f32
    %182 = vector.broadcast %cst_64 : f32 to vector<16x1xf32>
    %183 = arith.addf %179, %182 : vector<16x1xf32>
    %184 = math.rsqrt %183 : vector<16x1xf32>
    %185 = vector.broadcast %184 : vector<16x1xf32> to vector<16x32xf32>
    %186 = arith.mulf %181, %185 : vector<16x32xf32>
    %187 = vector.broadcast %165 : vector<1x32xf32> to vector<16x32xf32>
    %188 = arith.mulf %186, %187 : vector<16x32xf32>
    %189 = vector.broadcast %166 : vector<1x32xf32> to vector<16x32xf32>
    %190 = arith.addf %188, %189 : vector<16x32xf32>
    %c32 = arith.constant 32 : index
    %c0_65 = arith.constant 0 : index
    %191 = vector.load %arg2[%c32, %c0_65] : memref<64x768xf32, #tpu.memory_space<vmem>>, vector<32x768xf32>
    %cst_66 = arith.constant dense<0.000000e+00> : vector<16x768xf32>
    %192 = tpu.matmul %190, %191, %cst_66 {dimension_numbers = #tpu.dot_dimension_numbers<[1], [0], [0], [1], [0, 0, 1, 1], [], []>} : vector<16x32xf32>, vector<32x768xf32>, vector<16x768xf32> -> vector<16x768xf32>
    %193 = vector.extract_strided_slice %192 {offsets = [0, 0], sizes = [16, 16], strides = [1, 1]} : vector<16x768xf32> to vector<16x16xf32>
    %c15 = arith.constant 15 : index
    %c0_67 = arith.constant 0 : index
    %194 = vector.load %arg4[%c15, %c0_67] : memref<32x128xf32, #tpu.memory_space<vmem>>, vector<1x16xf32>
    %195 = vector.broadcast %194 : vector<1x16xf32> to vector<16x16xf32>
    %196 = arith.addf %193, %195 : vector<16x16xf32>
    %197 = vector.shape_cast %196 : vector<16x16xf32> to vector<2x8x16xf32>
    %198 = vector.extract_strided_slice %192 {offsets = [0, 128], sizes = [16, 16], strides = [1, 1]} : vector<16x768xf32> to vector<16x16xf32>
    %c16 = arith.constant 16 : index
    %c0_68 = arith.constant 0 : index
    %199 = vector.load %arg4[%c16, %c0_68] : memref<32x128xf32, #tpu.memory_space<vmem>>, vector<1x16xf32>
    %200 = vector.broadcast %199 : vector<1x16xf32> to vector<16x16xf32>
    %201 = arith.addf %198, %200 : vector<16x16xf32>
    %202 = vector.shape_cast %201 : vector<16x16xf32> to vector<2x8x16xf32>
    %203 = vector.extract_strided_slice %192 {offsets = [0, 256], sizes = [16, 16], strides = [1, 1]} : vector<16x768xf32> to vector<16x16xf32>
    %c17 = arith.constant 17 : index
    %c0_69 = arith.constant 0 : index
    %204 = vector.load %arg4[%c17, %c0_69] : memref<32x128xf32, #tpu.memory_space<vmem>>, vector<1x16xf32>
    %205 = vector.broadcast %204 : vector<1x16xf32> to vector<16x16xf32>
    %206 = arith.addf %203, %205 : vector<16x16xf32>
    %207 = vector.shape_cast %206 : vector<16x16xf32> to vector<2x8x16xf32>
    "tpu.trace_start"() <{level = 10 : i32, message = "bqd,bkd->bqk"}> : () -> ()
    %cst_70 = arith.constant dense<0.000000e+00> : vector<2x8x8xf32>
    %208 = tpu.matmul %197, %202, %cst_70 {dimension_numbers = #tpu.dot_dimension_numbers<[2], [2], [1], [1], [0, 0, 0, 1, 1, 1], [0], [0]>} : vector<2x8x16xf32>, vector<2x8x16xf32>, vector<2x8x8xf32> -> vector<2x8x8xf32>
    "tpu.trace_stop"() : () -> ()
    %209 = arith.addf %208, %45 : vector<2x8x8xf32>
    %cst_71 = arith.constant dense<0xFF800000> : vector<2x8xf32>
    %210 = vector.multi_reduction <maximumf>, %209, %cst_71 [2] : vector<2x8x8xf32> to vector<2x8xf32>
    %211 = vector.shape_cast %210 : vector<2x8xf32> to vector<2x8x1xf32>
    %212 = vector.broadcast %211 : vector<2x8x1xf32> to vector<2x8x8xf32>
    %213 = arith.subf %209, %212 : vector<2x8x8xf32>
    %214 = math.exp %213 : vector<2x8x8xf32>
    %cst_72 = arith.constant dense<0.000000e+00> : vector<2x8xf32>
    %215 = vector.multi_reduction <add>, %214, %cst_72 [2] : vector<2x8x8xf32> to vector<2x8xf32>
    %216 = vector.shape_cast %215 : vector<2x8xf32> to vector<2x8x1xf32>
    %217 = tpu.reciprocal %216 {approx = true} : vector<2x8x1xf32> -> vector<2x8x1xf32>
    %218 = vector.broadcast %217 : vector<2x8x1xf32> to vector<2x8x8xf32>
    %219 = arith.mulf %214, %218 : vector<2x8x8xf32>
    "tpu.trace_start"() <{level = 10 : i32, message = "bqk,bkd->bqd"}> : () -> ()
    %cst_73 = arith.constant dense<0.000000e+00> : vector<2x8x16xf32>
    %220 = tpu.matmul %219, %207, %cst_73 {dimension_numbers = #tpu.dot_dimension_numbers<[2], [1], [1], [2], [0, 0, 0, 1, 1, 2], [0], [0]>} : vector<2x8x8xf32>, vector<2x8x16xf32>, vector<2x8x16xf32> -> vector<2x8x16xf32>
    "tpu.trace_stop"() : () -> ()
    %221 = vector.shape_cast %220 : vector<2x8x16xf32> to vector<16x16xf32>
    %222 = vector.extract_strided_slice %192 {offsets = [0, 384], sizes = [16, 16], strides = [1, 1]} : vector<16x768xf32> to vector<16x16xf32>
    %c18 = arith.constant 18 : index
    %c0_74 = arith.constant 0 : index
    %223 = vector.load %arg4[%c18, %c0_74] : memref<32x128xf32, #tpu.memory_space<vmem>>, vector<1x16xf32>
    %224 = vector.broadcast %223 : vector<1x16xf32> to vector<16x16xf32>
    %225 = arith.addf %222, %224 : vector<16x16xf32>
    %226 = vector.shape_cast %225 : vector<16x16xf32> to vector<2x8x16xf32>
    %227 = vector.extract_strided_slice %192 {offsets = [0, 512], sizes = [16, 16], strides = [1, 1]} : vector<16x768xf32> to vector<16x16xf32>
    %c19 = arith.constant 19 : index
    %c0_75 = arith.constant 0 : index
    %228 = vector.load %arg4[%c19, %c0_75] : memref<32x128xf32, #tpu.memory_space<vmem>>, vector<1x16xf32>
    %229 = vector.broadcast %228 : vector<1x16xf32> to vector<16x16xf32>
    %230 = arith.addf %227, %229 : vector<16x16xf32>
    %231 = vector.shape_cast %230 : vector<16x16xf32> to vector<2x8x16xf32>
    %232 = vector.extract_strided_slice %192 {offsets = [0, 640], sizes = [16, 16], strides = [1, 1]} : vector<16x768xf32> to vector<16x16xf32>
    %c20 = arith.constant 20 : index
    %c0_76 = arith.constant 0 : index
    %233 = vector.load %arg4[%c20, %c0_76] : memref<32x128xf32, #tpu.memory_space<vmem>>, vector<1x16xf32>
    %234 = vector.broadcast %233 : vector<1x16xf32> to vector<16x16xf32>
    %235 = arith.addf %232, %234 : vector<16x16xf32>
    %236 = vector.shape_cast %235 : vector<16x16xf32> to vector<2x8x16xf32>
    "tpu.trace_start"() <{level = 10 : i32, message = "bqd,bkd->bqk"}> : () -> ()
    %cst_77 = arith.constant dense<0.000000e+00> : vector<2x8x8xf32>
    %237 = tpu.matmul %226, %231, %cst_77 {dimension_numbers = #tpu.dot_dimension_numbers<[2], [2], [1], [1], [0, 0, 0, 1, 1, 1], [0], [0]>} : vector<2x8x16xf32>, vector<2x8x16xf32>, vector<2x8x8xf32> -> vector<2x8x8xf32>
    "tpu.trace_stop"() : () -> ()
    %238 = arith.addf %237, %45 : vector<2x8x8xf32>
    %cst_78 = arith.constant dense<0xFF800000> : vector<2x8xf32>
    %239 = vector.multi_reduction <maximumf>, %238, %cst_78 [2] : vector<2x8x8xf32> to vector<2x8xf32>
    %240 = vector.shape_cast %239 : vector<2x8xf32> to vector<2x8x1xf32>
    %241 = vector.broadcast %240 : vector<2x8x1xf32> to vector<2x8x8xf32>
    %242 = arith.subf %238, %241 : vector<2x8x8xf32>
    %243 = math.exp %242 : vector<2x8x8xf32>
    %cst_79 = arith.constant dense<0.000000e+00> : vector<2x8xf32>
    %244 = vector.multi_reduction <add>, %243, %cst_79 [2] : vector<2x8x8xf32> to vector<2x8xf32>
    %245 = vector.shape_cast %244 : vector<2x8xf32> to vector<2x8x1xf32>
    %246 = tpu.reciprocal %245 {approx = true} : vector<2x8x1xf32> -> vector<2x8x1xf32>
    %247 = vector.broadcast %246 : vector<2x8x1xf32> to vector<2x8x8xf32>
    %248 = arith.mulf %243, %247 : vector<2x8x8xf32>
    "tpu.trace_start"() <{level = 10 : i32, message = "bqk,bkd->bqd"}> : () -> ()
    %cst_80 = arith.constant dense<0.000000e+00> : vector<2x8x16xf32>
    %249 = tpu.matmul %248, %236, %cst_80 {dimension_numbers = #tpu.dot_dimension_numbers<[2], [1], [1], [2], [0, 0, 0, 1, 1, 2], [0], [0]>} : vector<2x8x8xf32>, vector<2x8x16xf32>, vector<2x8x16xf32> -> vector<2x8x16xf32>
    "tpu.trace_stop"() : () -> ()
    %250 = vector.shape_cast %249 : vector<2x8x16xf32> to vector<16x16xf32>
    %c288 = arith.constant 288 : index
    %c0_81 = arith.constant 0 : index
    %251 = vector.load %arg3[%c288, %c0_81] : memref<448x128xf32, #tpu.memory_space<vmem>>, vector<16x32xf32>
    %cst_82 = arith.constant dense<0.000000e+00> : vector<16x32xf32>
    %252 = tpu.matmul %221, %251, %cst_82 {dimension_numbers = #tpu.dot_dimension_numbers<[1], [0], [0], [1], [0, 0, 1, 1], [], []>} : vector<16x16xf32>, vector<16x32xf32>, vector<16x32xf32> -> vector<16x32xf32>
    %c304 = arith.constant 304 : index
    %c0_83 = arith.constant 0 : index
    %253 = vector.load %arg3[%c304, %c0_83] : memref<448x128xf32, #tpu.memory_space<vmem>>, vector<16x32xf32>
    %cst_84 = arith.constant dense<0.000000e+00> : vector<16x32xf32>
    %254 = tpu.matmul %250, %253, %cst_84 {dimension_numbers = #tpu.dot_dimension_numbers<[1], [0], [0], [1], [0, 0, 1, 1], [], []>} : vector<16x16xf32>, vector<16x32xf32>, vector<16x32xf32> -> vector<16x32xf32>
    %255 = arith.addf %252, %254 : vector<16x32xf32>
    %c21 = arith.constant 21 : index
    %c0_85 = arith.constant 0 : index
    %256 = vector.load %arg4[%c21, %c0_85] : memref<32x128xf32, #tpu.memory_space<vmem>>, vector<1x32xf32>
    %257 = vector.broadcast %256 : vector<1x32xf32> to vector<16x32xf32>
    %258 = arith.addf %255, %257 : vector<16x32xf32>
    %259 = arith.addf %258, %190 : vector<16x32xf32>
    %c22 = arith.constant 22 : index
    %c0_86 = arith.constant 0 : index
    %260 = vector.load %arg4[%c22, %c0_86] : memref<32x128xf32, #tpu.memory_space<vmem>>, vector<1x32xf32>
    %c23 = arith.constant 23 : index
    %c0_87 = arith.constant 0 : index
    %261 = vector.load %arg4[%c23, %c0_87] : memref<32x128xf32, #tpu.memory_space<vmem>>, vector<1x32xf32>
    %cst_88 = arith.constant dense<0.000000e+00> : vector<16xf32>
    %262 = vector.multi_reduction <add>, %259, %cst_88 [1] : vector<16x32xf32> to vector<16xf32>
    %263 = vector.shape_cast %262 : vector<16xf32> to vector<16x1xf32>
    %cst_89 = arith.constant 3.200000e+01 : f32
    %264 = vector.broadcast %cst_89 : f32 to vector<16x1xf32>
    %265 = arith.divf %263, %264 : vector<16x1xf32>
    %266 = arith.mulf %259, %259 : vector<16x32xf32>
    %cst_90 = arith.constant dense<0.000000e+00> : vector<16xf32>
    %267 = vector.multi_reduction <add>, %266, %cst_90 [1] : vector<16x32xf32> to vector<16xf32>
    %268 = vector.shape_cast %267 : vector<16xf32> to vector<16x1xf32>
    %cst_91 = arith.constant 3.200000e+01 : f32
    %269 = vector.broadcast %cst_91 : f32 to vector<16x1xf32>
    %270 = arith.divf %268, %269 : vector<16x1xf32>
    %271 = arith.mulf %265, %265 : vector<16x1xf32>
    %272 = arith.subf %270, %271 : vector<16x1xf32>
    %cst_92 = arith.constant 0.000000e+00 : f32
    %273 = vector.broadcast %cst_92 : f32 to vector<16x1xf32>
    %274 = arith.maximumf %272, %273 : vector<16x1xf32>
    %275 = vector.broadcast %265 : vector<16x1xf32> to vector<16x32xf32>
    %276 = arith.subf %259, %275 : vector<16x32xf32>
    %cst_93 = arith.constant 9.99999996E-13 : f32
    %277 = vector.broadcast %cst_93 : f32 to vector<16x1xf32>
    %278 = arith.addf %274, %277 : vector<16x1xf32>
    %279 = math.rsqrt %278 : vector<16x1xf32>
    %280 = vector.broadcast %279 : vector<16x1xf32> to vector<16x32xf32>
    %281 = arith.mulf %276, %280 : vector<16x32xf32>
    %282 = vector.broadcast %260 : vector<1x32xf32> to vector<16x32xf32>
    %283 = arith.mulf %281, %282 : vector<16x32xf32>
    %284 = vector.broadcast %261 : vector<1x32xf32> to vector<16x32xf32>
    %285 = arith.addf %283, %284 : vector<16x32xf32>
    %c320 = arith.constant 320 : index
    %c0_94 = arith.constant 0 : index
    %286 = vector.load %arg3[%c320, %c0_94] : memref<448x128xf32, #tpu.memory_space<vmem>>, vector<32x64xf32>
    %cst_95 = arith.constant dense<0.000000e+00> : vector<16x64xf32>
    %287 = tpu.matmul %285, %286, %cst_95 {dimension_numbers = #tpu.dot_dimension_numbers<[1], [0], [0], [1], [0, 0, 1, 1], [], []>} : vector<16x32xf32>, vector<32x64xf32>, vector<16x64xf32> -> vector<16x64xf32>
    %c24 = arith.constant 24 : index
    %c0_96 = arith.constant 0 : index
    %288 = vector.load %arg4[%c24, %c0_96] : memref<32x128xf32, #tpu.memory_space<vmem>>, vector<1x64xf32>
    %289 = vector.broadcast %288 : vector<1x64xf32> to vector<16x64xf32>
    %290 = arith.addf %287, %289 : vector<16x64xf32>
    %291 = arith.mulf %290, %290 : vector<16x64xf32>
    %292 = arith.mulf %290, %291 : vector<16x64xf32>
    %cst_97 = arith.constant 4.471500e-02 : f32
    %293 = vector.broadcast %cst_97 : f32 to vector<16x64xf32>
    %294 = arith.mulf %293, %292 : vector<16x64xf32>
    %295 = arith.addf %290, %294 : vector<16x64xf32>
    %cst_98 = arith.constant 0.797884583 : f32
    %296 = vector.broadcast %cst_98 : f32 to vector<16x64xf32>
    %297 = arith.mulf %296, %295 : vector<16x64xf32>
    %298 = math.tanh %297 : vector<16x64xf32>
    %cst_99 = arith.constant 1.000000e+00 : f32
    %299 = vector.broadcast %cst_99 : f32 to vector<16x64xf32>
    %300 = arith.addf %299, %298 : vector<16x64xf32>
    %cst_100 = arith.constant 5.000000e-01 : f32
    %301 = vector.broadcast %cst_100 : f32 to vector<16x64xf32>
    %302 = arith.mulf %301, %300 : vector<16x64xf32>
    %303 = arith.mulf %290, %302 : vector<16x64xf32>
    %c352 = arith.constant 352 : index
    %c0_101 = arith.constant 0 : index
    %304 = vector.load %arg3[%c352, %c0_101] : memref<448x128xf32, #tpu.memory_space<vmem>>, vector<64x32xf32>
    %cst_102 = arith.constant dense<0.000000e+00> : vector<16x32xf32>
    %305 = tpu.matmul %303, %304, %cst_102 {dimension_numbers = #tpu.dot_dimension_numbers<[1], [0], [0], [1], [0, 0, 1, 1], [], []>} : vector<16x64xf32>, vector<64x32xf32>, vector<16x32xf32> -> vector<16x32xf32>
    %c25 = arith.constant 25 : index
    %c0_103 = arith.constant 0 : index
    %306 = vector.load %arg4[%c25, %c0_103] : memref<32x128xf32, #tpu.memory_space<vmem>>, vector<1x32xf32>
    %307 = vector.broadcast %306 : vector<1x32xf32> to vector<16x32xf32>
    %308 = arith.addf %305, %307 : vector<16x32xf32>
    %309 = arith.addf %308, %285 : vector<16x32xf32>
    %c26 = arith.constant 26 : index
    %c0_104 = arith.constant 0 : index
    %310 = vector.load %arg4[%c26, %c0_104] : memref<32x128xf32, #tpu.memory_space<vmem>>, vector<1x32xf32>
    %c27 = arith.constant 27 : index
    %c0_105 = arith.constant 0 : index
    %311 = vector.load %arg4[%c27, %c0_105] : memref<32x128xf32, #tpu.memory_space<vmem>>, vector<1x32xf32>
    %cst_106 = arith.constant dense<0.000000e+00> : vector<16xf32>
    %312 = vector.multi_reduction <add>, %309, %cst_106 [1] : vector<16x32xf32> to vector<16xf32>
    %313 = vector.shape_cast %312 : vector<16xf32> to vector<16x1xf32>
    %cst_107 = arith.constant 3.200000e+01 : f32
    %314 = vector.broadcast %cst_107 : f32 to vector<16x1xf32>
    %315 = arith.divf %313, %314 : vector<16x1xf32>
    %316 = arith.mulf %309, %309 : vector<16x32xf32>
    %cst_108 = arith.constant dense<0.000000e+00> : vector<16xf32>
    %317 = vector.multi_reduction <add>, %316, %cst_108 [1] : vector<16x32xf32> to vector<16xf32>
    %318 = vector.shape_cast %317 : vector<16xf32> to vector<16x1xf32>
    %cst_109 = arith.constant 3.200000e+01 : f32
    %319 = vector.broadcast %cst_109 : f32 to vector<16x1xf32>
    %320 = arith.divf %318, %319 : vector<16x1xf32>
    %321 = arith.mulf %315, %315 : vector<16x1xf32>
    %322 = arith.subf %320, %321 : vector<16x1xf32>
    %cst_110 = arith.constant 0.000000e+00 : f32
    %323 = vector.broadcast %cst_110 : f32 to vector<16x1xf32>
    %324 = arith.maximumf %322, %323 : vector<16x1xf32>
    %325 = vector.broadcast %315 : vector<16x1xf32> to vector<16x32xf32>
    %326 = arith.subf %309, %325 : vector<16x32xf32>
    %cst_111 = arith.constant 9.99999996E-13 : f32
    %327 = vector.broadcast %cst_111 : f32 to vector<16x1xf32>
    %328 = arith.addf %324, %327 : vector<16x1xf32>
    %329 = math.rsqrt %328 : vector<16x1xf32>
    %330 = vector.broadcast %329 : vector<16x1xf32> to vector<16x32xf32>
    %331 = arith.mulf %326, %330 : vector<16x32xf32>
    %332 = vector.broadcast %310 : vector<1x32xf32> to vector<16x32xf32>
    %333 = arith.mulf %331, %332 : vector<16x32xf32>
    %334 = vector.broadcast %311 : vector<1x32xf32> to vector<16x32xf32>
    %335 = arith.addf %333, %334 : vector<16x32xf32>
    %336 = vector.shape_cast %335 : vector<16x32xf32> to vector<2x8x32xf32>
    %337 = vector.extract_strided_slice %336 {offsets = [0, 0, 0], sizes = [2, 1, 32], strides = [1, 1, 1]} : vector<2x8x32xf32> to vector<2x1x32xf32>
    %338 = vector.shape_cast %337 : vector<2x1x32xf32> to vector<2x32xf32>
    %c416 = arith.constant 416 : index
    %c0_112 = arith.constant 0 : index
    %339 = vector.load %arg3[%c416, %c0_112] : memref<448x128xf32, #tpu.memory_space<vmem>>, vector<32x128xf32>
    %cst_113 = arith.constant dense<0.000000e+00> : vector<2x128xf32>
    %340 = tpu.matmul %338, %339, %cst_113 {dimension_numbers = #tpu.dot_dimension_numbers<[1], [0], [0], [1], [0, 0, 1, 1], [], []>} : vector<2x32xf32>, vector<32x128xf32>, vector<2x128xf32> -> vector<2x128xf32>
    %c28 = arith.constant 28 : index
    %c0_114 = arith.constant 0 : index
    %341 = vector.load %arg4[%c28, %c0_114] : memref<32x128xf32, #tpu.memory_space<vmem>>, vector<1x128xf32>
    %342 = vector.broadcast %341 : vector<1x128xf32> to vector<2x128xf32>
    %343 = arith.addf %340, %342 : vector<2x128xf32>
    %c0_115 = arith.constant 0 : index
    %c0_116 = arith.constant 0 : index
    %344 = vector.load %arg5[%c0_115, %c0_116] : memref<2x128xf32, #tpu.memory_space<vmem>>, vector<2x128xf32>
    tpu.vector_store %arg5[%c0_115, %c0_116], %343 {strides = array<i32>} : memref<2x128xf32, #tpu.memory_space<vmem>>, vector<2x128xf32>,
    return
  }
}

</mosaic_0001>

<llo_original>
// kernel: amr_classifier_forward.1
$region0: #{amr_classifier_forward.1}
  #allocation0 [shape = 'u32[]', space=smem, size = 0x4, offset = 0x4, fixed_abs, tag = 'smem constant byte address 0x4 - core index']
  #allocation1 [shape = 'u32[72,128]{1,0:T(1,128)}', space=vmem, size = 0x9000, scoped, tag = 'internal scratch']
  %s0 = inlined_call_operand.vmem [shape: s32[16,1], index: 0, kind: input, shape index: {}]
  %s1 = inlined_call_operand.vmem [shape: s32[2,8], index: 1, kind: input, shape index: {}]
  %s2 = inlined_call_operand.hbm [shape: f32[64,768], index: 2, kind: input, shape index: {}]
  %s3 = inlined_call_operand.hbm [shape: f32[448,128], index: 3, kind: input, shape index: {}]
  %s4 = inlined_call_operand.hbm [shape: f32[32,128], index: 4, kind: input, shape index: {}]
  %s5 = inlined_call_operand.hbm [shape: f32[2,128], index: 5, kind: output, shape index: {}]
  %s6 = sld [smem:[#allocation0]]
  $region42: #{amr_classifier_forward.1} parent=0
    _
  %s8 = ssub.s32 1, %s6
  %s9 = scalar_select 0, %s8, %s6
  $region1: #{amr_classifier_forward.1} parent=0
    #allocation2 [shape = 'u8[196608]{0}', space=vmem, size = 0x30000, scoped, tag = 'input window, operand 2, single buffered']
    #allocation3 [shape = 's32[1]{0}', space=sflag, size = 0x4, scoped, tag = 'scoped memory for amr_classifier_forward.1']
    #allocation4 [shape = 's32[1]{0}', space=sflag, size = 0x4, scoped, tag = 'scoped memory for amr_classifier_forward.1']
    #allocation5 [shape = 'u8[229376]{0}', space=vmem, size = 0x38000, scoped, tag = 'input window, operand 3, single buffered']
    #allocation6 [shape = 's32[1]{0}', space=sflag, size = 0x4, scoped, tag = 'scoped memory for amr_classifier_forward.1']
    #allocation7 [shape = 'u8[16384]{0}', space=vmem, size = 0x4000, scoped, tag = 'input window, operand 4, single buffered']
    #allocation8 [shape = 'u8[1024]{0}', space=vmem, size = 0x400, scoped, tag = 'output window, operand 0, single buffered']
    %10 = vsyncpa [#allocation3], 0
    %11 = vsyncpa [#allocation6], 0
    %12 = vsyncpa [#allocation4], 0
    // Predicated region
    $region2: #{amr_classifier_forward.1} parent=1 // pred_check
      _
    $region3: #{amr_classifier_forward.1} parent=1 // pred_check_branch
      %14 = sbr.rel (0) target = $region5
    $region4: #{amr_classifier_forward.1} parent=1 // pred_region
      _
    $region5: #{amr_classifier_forward.1} parent=1 // pred_fallthru
      _
    // Predicated region
    $region6: #{amr_classifier_forward.1} parent=1 // pred_check
      _
    $region7: #{amr_classifier_forward.1} parent=1 // pred_check_branch
      %16 = sbr.rel (0) target = $region9
    $region8: #{amr_classifier_forward.1} parent=1 // pred_region
      _
    $region9: #{amr_classifier_forward.1} parent=1 // pred_fallthru
      _
    // Predicated region
    $region10: #{amr_classifier_forward.1} parent=1 // pred_check
      _
    $region11: #{amr_classifier_forward.1} parent=1 // pred_check_branch
      %18 = sbr.rel (0) target = $region13
    $region12: #{amr_classifier_forward.1} parent=1 // pred_region
      %20 = vsyncadd [#allocation3], 0
      %s21 = sshll.u32 %s2, 4
      %s22 = int_to_ptr.hbm [resolvable:$true] %s21
      %s23 = sshll.u32 [#allocation2], 4
      %s24 = int_to_ptr.vmem [resolvable:$true] %s23
      %29 = dma.hbm_to_vmem [thread:$0]  %s22, 6144, %s24, [#allocation3], 768, 768, 48
    $region13: #{amr_classifier_forward.1} parent=1 // pred_fallthru
      _
    // Predicated region
    $region14: #{amr_classifier_forward.1} parent=1 // pred_check
      _
    $region15: #{amr_classifier_forward.1} parent=1 // pred_check_branch
      %31 = sbr.rel (0) target = $region17
    $region16: #{amr_classifier_forward.1} parent=1 // pred_region
      %33 = vsyncadd [#allocation6], 0
      %s34 = sshll.u32 %s3, 4
      %s35 = int_to_ptr.hbm [resolvable:$true] %s34
      %s36 = sshll.u32 [#allocation5], 4
      %s37 = int_to_ptr.vmem [resolvable:$true] %s36
      %42 = dma.hbm_to_vmem [thread:$0]  %s35, 7168, %s37, [#allocation6], 128, 128, 8
    $region17: #{amr_classifier_forward.1} parent=1 // pred_fallthru
      _
    // Predicated region
    $region18: #{amr_classifier_forward.1} parent=1 // pred_check
      _
    $region19: #{amr_classifier_forward.1} parent=1 // pred_check_branch
      %44 = sbr.rel (0) target = $region21
    $region20: #{amr_classifier_forward.1} parent=1 // pred_region
      %46 = vsyncadd [#allocation6], 0
      %s47 = sshll.u32 %s4, 4
      %s48 = int_to_ptr.hbm [resolvable:$true] %s47
      %s49 = sshll.u32 [#allocation7], 4
      %s50 = int_to_ptr.vmem [resolvable:$true] %s49
      %55 = dma.hbm_to_vmem [thread:$0]  %s48, 512, %s50, [#allocation6], 128, 128, 8
    $region21: #{amr_classifier_forward.1} parent=1 // pred_fallthru
      _
    // Predicated region
    $region22: #{amr_classifier_forward.1} parent=1 // pred_check
      _
    $region23: #{amr_classifier_forward.1} parent=1 // pred_check_branch
      %57 = sbr.rel (0) target = $region25
    $region24: #{amr_classifier_forward.1} parent=1 // pred_region
      %59 = dma.done [#allocation3], 6144
    $region25: #{amr_classifier_forward.1} parent=1 // pred_fallthru
      _
    // Predicated region
    $region26: #{amr_classifier_forward.1} parent=1 // pred_check
      _
    $region27: #{amr_classifier_forward.1} parent=1 // pred_check_branch
      %61 = sbr.rel (0) target = $region29
    $region28: #{amr_classifier_forward.1} parent=1 // pred_region
      %63 = dma.done [#allocation6], 7168
    $region29: #{amr_classifier_forward.1} parent=1 // pred_fallthru
      _
    // Predicated region
    $region30: #{amr_classifier_forward.1} parent=1 // pred_check
      _
    $region31: #{amr_classifier_forward.1} parent=1 // pred_check_branch
      %65 = sbr.rel (0) target = $region33
    $region32: #{amr_classifier_forward.1} parent=1 // pred_region
      %67 = dma.done [#allocation6], 512
    $region33: #{amr_classifier_forward.1} parent=1 // pred_fallthru
      _
    %v68 = vld [vmem:[%s0] sm:$0xff]
    %v69 = vld [vmem:[%s0 + $0x8] sm:$0xff]
    %v70 = vlaneseq
    %v71 = vand.u32 %v70, 127
    %72 = vset.pattern.permute.xlu0 0
    %73 = vperm.xlu0 %72, %v68
    %v74 = vpop.permute.xlu0 %73
    %75 = vset.pattern.permute.xlu0 0
    %76 = vperm.xlu0 %75, %v69
    %v77 = vpop.permute.xlu0 %76
    %vm78 = vcmp.eq.s32.totalorder %v71, %v74
    %vm79 = vcmp.eq.s32.totalorder %v71, %v77
    %v80 = vsel %vm78, 1, 0
    %v81 = vsel %vm79, 1, 0
    %v82 = vcvt.s32.f32 %v80
    %v83 = vcvt.s32.f32 %v81
    %v84 = vld [vmem:[#allocation5] sm:$0xff]
    %v85 = vld [vmem:[#allocation5 + $0x8] sm:$0xff]
    %v86 = vld [vmem:[#allocation5 + $0x10] sm:$0xff]
    %v87 = vld [vmem:[#allocation5 + $0x18] sm:$0xff]
    %v88 = vld [vmem:[#allocation5 + $0x20] sm:$0xff]
    %v89 = vld [vmem:[#allocation5 + $0x28] sm:$0xff]
    %v90 = vld [vmem:[#allocation5 + $0x30] sm:$0xff]
    %v91 = vld [vmem:[#allocation5 + $0x38] sm:$0xff]
    %v92 = vld [vmem:[#allocation5 + $0x40] sm:$0xff]
    %v93 = vld [vmem:[#allocation5 + $0x48] sm:$0xff]
    %v94 = vld [vmem:[#allocation5 + $0x50] sm:$0xff]
    %v95 = vld [vmem:[#allocation5 + $0x58] sm:$0xff]
    %v96 = vld [vmem:[#allocation5 + $0x60] sm:$0xff]
    %v97 = vld [vmem:[#allocation5 + $0x68] sm:$0xff]
    %v98 = vld [vmem:[#allocation5 + $0x70] sm:$0xff]
    %v99 = vld [vmem:[#allocation5 + $0x78] sm:$0xff]
    %v100 = vld [vmem:[#allocation5 + $0x80] sm:$0xff]
    %101 = vmatpush.msra.mxu0 %v99
    %102 = vmatpush.msra.mxu0 %v98
    %103 = vmatpush.msra.mxu0 %v97
    %104 = vmatpush.msra.mxu0 %v96
    %105 = vmatpush.msra.mxu0 %v95
    %106 = vmatpush.msra.mxu0 %v94
    %107 = vmatpush.msra.mxu0 %v93
    %108 = vmatpush.msra.mxu0 %v92
    %109 = vmatpush.msra.mxu0 %v91
    %110 = vmatpush.msra.mxu0 %v90
    %111 = vmatpush.msra.mxu0 %v89
    %112 = vmatpush.msra.mxu0 %v88
    %113 = vmatpush.msra.mxu0 %v87
    %114 = vmatpush.msra.mxu0 %v86
    %115 = vmatpush.msra.mxu0 %v85
    %116 = vmatpush.msra.mxu0 %v84
    %117 = vmatmul.f32.gmra.mxu0 %v82
    %v118 = vpop.f32.mrf.mxu0
    %v119 = vadd.f32 %v100, %v118
    %120 = vmatmul.f32.gmra.mxu0 %v83
    %v121 = vpop.f32.mrf.mxu0
    %v122 = vadd.f32 %v100, %v121
    %123 = vdwg.mxu0
    %v124 = vld [vmem:[#allocation7] sm:$0x1]
    %v125 = vld [vmem:[#allocation7 + $0x1] sm:$0x1]
    %vm126 = vcmask 261120
    %v127 = vsel %vm126, %v119, 0.0
    %128 = vadd.xlane.f32.xlu0 %v127
    %v129 = vpop.xlane.xlu0 %128
    %v130 = vsel %vm126, %v122, 0.0
    %131 = vadd.xlane.f32.xlu0 %v130
    %v132 = vpop.xlane.xlu0 %131
    %v133 = vrcp.pop 32.0
    %v134 = vmul.f32 32.0, %v133
    %v135 = vsub.f32 1.0, %v134
    %v136 = vmul.f32 %v133, %v135
    %v137 = vadd.f32 %v133, %v136
    %vm138 = vweird.f32 %v133
    %v139 = vsel %vm138, %v133, %v137
    %v140 = vmul.f32 %v129, %v139
    %v141 = vmul.f32 %v132, %v139
    %v142 = vmul.f32 %v119, %v119
    %v143 = vmul.f32 %v122, %v122
    %v144 = vsel %vm126, %v142, 0.0
    %145 = vadd.xlane.f32.xlu0 %v144
    %v146 = vpop.xlane.xlu0 %145
    %v147 = vsel %vm126, %v143, 0.0
    %148 = vadd.xlane.f32.xlu0 %v147
    %v149 = vpop.xlane.xlu0 %148
    %v150 = vmul.f32 %v146, %v139
    %v151 = vmul.f32 %v149, %v139
    %v152 = vmul.f32 %v140, %v140
    %v153 = vmul.f32 %v141, %v141
    %v154 = vsub.f32 %v150, %v152
    %v155 = vsub.f32 %v151, %v153
    %v156 = vmax.f32 %v154, 0.0
    %v157 = vmax.f32 %v155, 0.0
    %v158 = vsub.f32 %v119, %v140
    %v159 = vsub.f32 %v122, %v141
    %v160 = vadd.f32 %v156, 1e-12
    %v161 = vadd.f32 %v157, 1e-12
    %v162 = vrsqrt.pop %v160
    %v163 = vmul.f32 %v162, %v160
    %v164 = vmul.f32 %v163, %v162
    %v165 = vmul.f32 0.5, %v164
    %v166 = vsub.f32 1.5, %v165
    %v167 = vmul.f32 %v162, %v166
    %vm168 = vweird.f32 %v160
    %vm169 = vweird.f32 %v162
    %vm170 = vmor %vm168, %vm169
    %v171 = vsel %vm170, %v162, %v167
    %v172 = vrsqrt.pop %v161
    %v173 = vmul.f32 %v172, %v161
    %v174 = vmul.f32 %v173, %v172
    %v175 = vmul.f32 0.5, %v174
    %v176 = vsub.f32 1.5, %v175
    %v177 = vmul.f32 %v172, %v176
    %vm178 = vweird.f32 %v161
    %vm179 = vweird.f32 %v172
    %vm180 = vmor %vm178, %vm179
    %v181 = vsel %vm180, %v172, %v177
    %v182 = vmul.f32 %v158, %v171
    %v183 = vmul.f32 %v159, %v181
    %v184 = vperm.slane %v124, 0
    %v185 = vmul.f32 %v182, %v184
    %v186 = vmul.f32 %v183, %v184
    %v187 = vperm.slane %v125, 0
    %v188 = vadd.f32 %v185, %v187
    %v189 = vadd.f32 %v186, %v187
    %v190 = vld [vmem:[%s1] sm:$0x3]
    %v191 = vcvt.s32.f32 %v190
    %v192 = vsub.f32 1.0, %v191
    %v193 = vmul.f32 %v192, -1e+09
    %v195 = vrot.slane %v193, 1
    %v196 = vperm.slane %v193, 0
    %v197 = vperm.slane %v195, 0
    %v200 = vld [vmem:[#allocation2] sm:$0xff]
    %v201 = vld [vmem:[#allocation2 + $0x8] sm:$0xff]
    %v202 = vld [vmem:[#allocation2 + $0x10] sm:$0xff]
    %v203 = vld [vmem:[#allocation2 + $0x18] sm:$0xff]
    %v204 = vld [vmem:[#allocation2 + $0x20] sm:$0xff]
    %v205 = vld [vmem:[#allocation2 + $0x28] sm:$0xff]
    %v206 = vld [vmem:[#allocation2 + $0x30] sm:$0xff]
    %v207 = vld [vmem:[#allocation2 + $0x38] sm:$0xff]
    %v208 = vld [vmem:[#allocation2 + $0x40] sm:$0xff]
    %v209 = vld [vmem:[#allocation2 + $0x48] sm:$0xff]
    %v210 = vld [vmem:[#allocation2 + $0x50] sm:$0xff]
    %v211 = vld [vmem:[#allocation2 + $0x58] sm:$0xff]
    %v212 = vld [vmem:[#allocation2 + $0x60] sm:$0xff]
    %v213 = vld [vmem:[#allocation2 + $0x68] sm:$0xff]
    %v214 = vld [vmem:[#allocation2 + $0x70] sm:$0xff]
    %v215 = vld [vmem:[#allocation2 + $0x78] sm:$0xff]
    %v216 = vld [vmem:[#allocation2 + $0x80] sm:$0xff]
    %v217 = vld [vmem:[#allocation2 + $0x88] sm:$0xff]
    %v218 = vld [vmem:[#allocation2 + $0x90] sm:$0xff]
    %v219 = vld [vmem:[#allocation2 + $0x98] sm:$0xff]
    %v220 = vld [vmem:[#allocation2 + $0xa0] sm:$0xff]
    %v221 = vld [vmem:[#allocation2 + $0xa8] sm:$0xff]
    %v222 = vld [vmem:[#allocation2 + $0xb0] sm:$0xff]
    %v223 = vld [vmem:[#allocation2 + $0xb8] sm:$0xff]
    %v225 = vsel %vm126, %v188, 0
    %v228 = vsel %vm126, %v189, 0
    %230 = vmatpush.msra.mxu0 0.0
    %231 = vmatpush.msra.mxu0 0.0
    %232 = vmatpush.msra.mxu0 0.0
    %233 = vmatpush.msra.mxu0 0.0
    %234 = vmatpush.msra.mxu0 0.0
    %235 = vmatpush.msra.mxu0 0.0
    %236 = vmatpush.msra.mxu0 0.0
    %237 = vmatpush.msra.mxu0 0.0
    %238 = vmatpush.msra.mxu0 0.0
    %239 = vmatpush.msra.mxu0 0.0
    %240 = vmatpush.msra.mxu0 0.0
    %241 = vmatpush.msra.mxu0 0.0
    %242 = vmatpush.msra.mxu0 %v218
    %243 = vmatpush.msra.mxu0 %v212
    %244 = vmatpush.msra.mxu0 %v206
    %245 = vmatpush.msra.mxu0 %v200
    %246 = vmatmul.f32.gmra.mxu0 %v225
    %v247 = vpop.f32.mrf.mxu0
    %v248 = vadd.f32 0.0, %v247
    %249 = vmatmul.f32.gmra.mxu0 %v228
    %v250 = vpop.f32.mrf.mxu0
    %v251 = vadd.f32 0.0, %v250
    %252 = vdwg.mxu0
    %253 = vmatpush.msra.mxu0 0.0
    %254 = vmatpush.msra.mxu0 0.0
    %255 = vmatpush.msra.mxu0 0.0
    %256 = vmatpush.msra.mxu0 0.0
    %257 = vmatpush.msra.mxu0 0.0
    %258 = vmatpush.msra.mxu0 0.0
    %259 = vmatpush.msra.mxu0 0.0
    %260 = vmatpush.msra.mxu0 0.0
    %261 = vmatpush.msra.mxu0 0.0
    %262 = vmatpush.msra.mxu0 0.0
    %263 = vmatpush.msra.mxu0 0.0
    %264 = vmatpush.msra.mxu0 0.0
    %265 = vmatpush.msra.mxu0 %v219
    %266 = vmatpush.msra.mxu0 %v213
    %267 = vmatpush.msra.mxu0 %v207
    %268 = vmatpush.msra.mxu0 %v201
    %269 = vmatmul.f32.gmra.mxu0 %v225
    %v270 = vpop.f32.mrf.mxu0
    %v271 = vadd.f32 0.0, %v270
    %272 = vmatmul.f32.gmra.mxu0 %v228
    %v273 = vpop.f32.mrf.mxu0
    %v274 = vadd.f32 0.0, %v273
    %275 = vdwg.mxu0
    %276 = vmatpush.msra.mxu0 0.0
    %277 = vmatpush.msra.mxu0 0.0
    %278 = vmatpush.msra.mxu0 0.0
    %279 = vmatpush.msra.mxu0 0.0
    %280 = vmatpush.msra.mxu0 0.0
    %281 = vmatpush.msra.mxu0 0.0
    %282 = vmatpush.msra.mxu0 0.0
    %283 = vmatpush.msra.mxu0 0.0
    %284 = vmatpush.msra.mxu0 0.0
    %285 = vmatpush.msra.mxu0 0.0
    %286 = vmatpush.msra.mxu0 0.0
    %287 = vmatpush.msra.mxu0 0.0
    %288 = vmatpush.msra.mxu0 %v220
    %289 = vmatpush.msra.mxu0 %v214
    %290 = vmatpush.msra.mxu0 %v208
    %291 = vmatpush.msra.mxu0 %v202
    %292 = vmatmul.f32.gmra.mxu0 %v225
    %v293 = vpop.f32.mrf.mxu0
    %v294 = vadd.f32 0.0, %v293
    %295 = vmatmul.f32.gmra.mxu0 %v228
    %v296 = vpop.f32.mrf.mxu0
    %v297 = vadd.f32 0.0, %v296
    %298 = vdwg.mxu0
    %299 = vmatpush.msra.mxu0 0.0
    %300 = vmatpush.msra.mxu0 0.0
    %301 = vmatpush.msra.mxu0 0.0
    %302 = vmatpush.msra.mxu0 0.0
    %303 = vmatpush.msra.mxu0 0.0
    %304 = vmatpush.msra.mxu0 0.0
    %305 = vmatpush.msra.mxu0 0.0
    %306 = vmatpush.msra.mxu0 0.0
    %307 = vmatpush.msra.mxu0 0.0
    %308 = vmatpush.msra.mxu0 0.0
    %309 = vmatpush.msra.mxu0 0.0
    %310 = vmatpush.msra.mxu0 0.0
    %311 = vmatpush.msra.mxu0 %v221
    %312 = vmatpush.msra.mxu0 %v215
    %313 = vmatpush.msra.mxu0 %v209
    %314 = vmatpush.msra.mxu0 %v203
    %315 = vmatmul.f32.gmra.mxu0 %v225
    %v316 = vpop.f32.mrf.mxu0
    %v317 = vadd.f32 0.0, %v316
    %318 = vmatmul.f32.gmra.mxu0 %v228
    %v319 = vpop.f32.mrf.mxu0
    %v320 = vadd.f32 0.0, %v319
    %321 = vdwg.mxu0
    %322 = vmatpush.msra.mxu0 0.0
    %323 = vmatpush.msra.mxu0 0.0
    %324 = vmatpush.msra.mxu0 0.0
    %325 = vmatpush.msra.mxu0 0.0
    %326 = vmatpush.msra.mxu0 0.0
    %327 = vmatpush.msra.mxu0 0.0
    %328 = vmatpush.msra.mxu0 0.0
    %329 = vmatpush.msra.mxu0 0.0
    %330 = vmatpush.msra.mxu0 0.0
    %331 = vmatpush.msra.mxu0 0.0
    %332 = vmatpush.msra.mxu0 0.0
    %333 = vmatpush.msra.mxu0 0.0
    %334 = vmatpush.msra.mxu0 %v222
    %335 = vmatpush.msra.mxu0 %v216
    %336 = vmatpush.msra.mxu0 %v210
    %337 = vmatpush.msra.mxu0 %v204
    %338 = vmatmul.f32.gmra.mxu0 %v225
    %v339 = vpop.f32.mrf.mxu0
    %v340 = vadd.f32 0.0, %v339
    %341 = vmatmul.f32.gmra.mxu0 %v228
    %v342 = vpop.f32.mrf.mxu0
    %v343 = vadd.f32 0.0, %v342
    %344 = vdwg.mxu0
    %345 = vmatpush.msra.mxu0 0.0
    %346 = vmatpush.msra.mxu0 0.0
    %347 = vmatpush.msra.mxu0 0.0
    %348 = vmatpush.msra.mxu0 0.0
    %349 = vmatpush.msra.mxu0 0.0
    %350 = vmatpush.msra.mxu0 0.0
    %351 = vmatpush.msra.mxu0 0.0
    %352 = vmatpush.msra.mxu0 0.0
    %353 = vmatpush.msra.mxu0 0.0
    %354 = vmatpush.msra.mxu0 0.0
    %355 = vmatpush.msra.mxu0 0.0
    %356 = vmatpush.msra.mxu0 0.0
    %357 = vmatpush.msra.mxu0 %v223
    %358 = vmatpush.msra.mxu0 %v217
    %359 = vmatpush.msra.mxu0 %v211
    %360 = vmatpush.msra.mxu0 %v205
    %361 = vmatmul.f32.gmra.mxu0 %v225
    %v362 = vpop.f32.mrf.mxu0
    %v363 = vadd.f32 0.0, %v362
    %364 = vmatmul.f32.gmra.mxu0 %v228
    %v365 = vpop.f32.mrf.mxu0
    %v366 = vadd.f32 0.0, %v365
    %367 = vdwg.mxu0
    %v368 = vld [vmem:[#allocation7 + $0x2] sm:$0x1]
    %v369 = vperm.slane %v368, 0
    %v370 = vadd.f32 %v248, %v369
    %v371 = vadd.f32 %v251, %v369
    %v372 = vld [vmem:[#allocation7 + $0x3] sm:$0x1]
    %v373 = vperm.slane %v372, 0
    %v374 = vadd.f32 %v271, %v373
    %v375 = vadd.f32 %v274, %v373
    %v376 = vld [vmem:[#allocation7 + $0x4] sm:$0x1]
    %v377 = vperm.slane %v376, 0
    %v378 = vadd.f32 %v294, %v377
    %v379 = vadd.f32 %v297, %v377
    %vm380 = vcmask 130048
    %v382 = vsel %vm380, %v370, 0
    %v385 = vsel %vm380, %v374, 0
    %387 = vmatpush.xpose.msra.mxu0 0.0
    %388 = vmatpush.xpose.msra.mxu0 0.0
    %389 = vmatpush.xpose.msra.mxu0 0.0
    %390 = vmatpush.xpose.msra.mxu0 0.0
    %391 = vmatpush.xpose.msra.mxu0 0.0
    %392 = vmatpush.xpose.msra.mxu0 0.0
    %393 = vmatpush.xpose.msra.mxu0 0.0
    %394 = vmatpush.xpose.msra.mxu0 0.0
    %395 = vmatpush.xpose.msra.mxu0 0.0
    %396 = vmatpush.xpose.msra.mxu0 0.0
    %397 = vmatpush.xpose.msra.mxu0 0.0
    %398 = vmatpush.xpose.msra.mxu0 0.0
    %399 = vmatpush.xpose.msra.mxu0 0.0
    %400 = vmatpush.xpose.msra.mxu0 0.0
    %401 = vmatpush.xpose.msra.mxu0 0.0
    %402 = vmatpush.xpose.msra.mxu0 %v385
    %403 = vmatmul.f32.gmra.mxu0 %v382
    %v404 = vpop.f32.mrf.mxu0
    %v405 = vadd.f32 %v196, %v404
    %406 = vdwg.mxu0
    %v408 = vsel %vm380, %v371, 0
    %v411 = vsel %vm380, %v375, 0
    %413 = vmatpush.xpose.msra.mxu0 0.0
    %414 = vmatpush.xpose.msra.mxu0 0.0
    %415 = vmatpush.xpose.msra.mxu0 0.0
    %416 = vmatpush.xpose.msra.mxu0 0.0
    %417 = vmatpush.xpose.msra.mxu0 0.0
    %418 = vmatpush.xpose.msra.mxu0 0.0
    %419 = vmatpush.xpose.msra.mxu0 0.0
    %420 = vmatpush.xpose.msra.mxu0 0.0
    %421 = vmatpush.xpose.msra.mxu0 0.0
    %422 = vmatpush.xpose.msra.mxu0 0.0
    %423 = vmatpush.xpose.msra.mxu0 0.0
    %424 = vmatpush.xpose.msra.mxu0 0.0
    %425 = vmatpush.xpose.msra.mxu0 0.0
    %426 = vmatpush.xpose.msra.mxu0 0.0
    %427 = vmatpush.xpose.msra.mxu0 0.0
    %428 = vmatpush.xpose.msra.mxu0 %v411
    %429 = vmatmul.f32.gmra.mxu0 %v408
    %v430 = vpop.f32.mrf.mxu0
    %v431 = vadd.f32 %v197, %v430
    %432 = vdwg.mxu0
    %vm433 = vcmask 64512
    %v434 = vsel %vm433, %v405, -inf
    %435 = vmax.xlane.f32.xlu0 %v434
    %v436 = vpop.xlane.xlu0 %435
    %v437 = vsel %vm433, %v431, -inf
    %438 = vmax.xlane.f32.xlu0 %v437
    %v439 = vpop.xlane.xlu0 %438
    %v440 = vsub.f32 %v405, %v436
    %v441 = vsub.f32 %v431, %v439
    %v442 = vmul.f32 %v440, 1.442695
    %v443 = vpow.pop %v442
    %v444 = vmul.f32 %v441, 1.442695
    %v445 = vpow.pop %v444
    %v446 = vsel %vm433, %v443, 0.0
    %447 = vadd.xlane.f32.xlu0 %v446
    %v448 = vpop.xlane.xlu0 %447
    %v449 = vsel %vm433, %v445, 0.0
    %450 = vadd.xlane.f32.xlu0 %v449
    %v451 = vpop.xlane.xlu0 %450
    %v452 = vrcp.pop %v448
    %v453 = vrcp.pop %v451
    %v454 = vmul.f32 %v443, %v452
    %v455 = vmul.f32 %v445, %v453
    %v457 = vsel %vm433, %v454, 0
    %459 = vmatpush.msra.mxu0 0.0
    %460 = vmatpush.msra.mxu0 0.0
    %461 = vmatpush.msra.mxu0 0.0
    %462 = vmatpush.msra.mxu0 0.0
    %463 = vmatpush.msra.mxu0 0.0
    %464 = vmatpush.msra.mxu0 0.0
    %465 = vmatpush.msra.mxu0 0.0
    %466 = vmatpush.msra.mxu0 0.0
    %467 = vmatpush.msra.mxu0 0.0
    %468 = vmatpush.msra.mxu0 0.0
    %469 = vmatpush.msra.mxu0 0.0
    %470 = vmatpush.msra.mxu0 0.0
    %471 = vmatpush.msra.mxu0 0.0
    %472 = vmatpush.msra.mxu0 0.0
    %473 = vmatpush.msra.mxu0 0.0
    %474 = vmatpush.msra.mxu0 %v378
    %475 = vmatmul.f32.gmra.mxu0 %v457
    %v476 = vpop.f32.mrf.mxu0
    %v477 = vadd.f32 0.0, %v476
    %478 = vdwg.mxu0
    %v480 = vsel %vm433, %v455, 0
    %482 = vmatpush.msra.mxu0 0.0
    %483 = vmatpush.msra.mxu0 0.0
    %484 = vmatpush.msra.mxu0 0.0
    %485 = vmatpush.msra.mxu0 0.0
    %486 = vmatpush.msra.mxu0 0.0
    %487 = vmatpush.msra.mxu0 0.0
    %488 = vmatpush.msra.mxu0 0.0
    %489 = vmatpush.msra.mxu0 0.0
    %490 = vmatpush.msra.mxu0 0.0
    %491 = vmatpush.msra.mxu0 0.0
    %492 = vmatpush.msra.mxu0 0.0
    %493 = vmatpush.msra.mxu0 0.0
    %494 = vmatpush.msra.mxu0 0.0
    %495 = vmatpush.msra.mxu0 0.0
    %496 = vmatpush.msra.mxu0 0.0
    %497 = vmatpush.msra.mxu0 %v379
    %498 = vmatmul.f32.gmra.mxu0 %v480
    %v499 = vpop.f32.mrf.mxu0
    %v500 = vadd.f32 0.0, %v499
    %501 = vdwg.mxu0
    %v502 = vld [vmem:[#allocation7 + $0x5] sm:$0x1]
    %v503 = vperm.slane %v502, 0
    %v504 = vadd.f32 %v317, %v503
    %v505 = vadd.f32 %v320, %v503
    %v506 = vld [vmem:[#allocation7 + $0x6] sm:$0x1]
    %v507 = vperm.slane %v506, 0
    %v508 = vadd.f32 %v340, %v507
    %v509 = vadd.f32 %v343, %v507
    %v510 = vld [vmem:[#allocation7 + $0x7] sm:$0x1]
    %v511 = vperm.slane %v510, 0
    %v512 = vadd.f32 %v363, %v511
    %v513 = vadd.f32 %v366, %v511
    %v515 = vsel %vm380, %v504, 0
    %v518 = vsel %vm380, %v508, 0
    %520 = vmatpush.xpose.msra.mxu0 0.0
    %521 = vmatpush.xpose.msra.mxu0 0.0
    %522 = vmatpush.xpose.msra.mxu0 0.0
    %523 = vmatpush.xpose.msra.mxu0 0.0
    %524 = vmatpush.xpose.msra.mxu0 0.0
    %525 = vmatpush.xpose.msra.mxu0 0.0
    %526 = vmatpush.xpose.msra.mxu0 0.0
    %527 = vmatpush.xpose.msra.mxu0 0.0
    %528 = vmatpush.xpose.msra.mxu0 0.0
    %529 = vmatpush.xpose.msra.mxu0 0.0
    %530 = vmatpush.xpose.msra.mxu0 0.0
    %531 = vmatpush.xpose.msra.mxu0 0.0
    %532 = vmatpush.xpose.msra.mxu0 0.0
    %533 = vmatpush.xpose.msra.mxu0 0.0
    %534 = vmatpush.xpose.msra.mxu0 0.0
    %535 = vmatpush.xpose.msra.mxu0 %v518
    %536 = vmatmul.f32.gmra.mxu0 %v515
    %v537 = vpop.f32.mrf.mxu0
    %v538 = vadd.f32 %v196, %v537
    %539 = vdwg.mxu0
    %v541 = vsel %vm380, %v505, 0
    %v544 = vsel %vm380, %v509, 0
    %546 = vmatpush.xpose.msra.mxu0 0.0
    %547 = vmatpush.xpose.msra.mxu0 0.0
    %548 = vmatpush.xpose.msra.mxu0 0.0
    %549 = vmatpush.xpose.msra.mxu0 0.0
    %550 = vmatpush.xpose.msra.mxu0 0.0
    %551 = vmatpush.xpose.msra.mxu0 0.0
    %552 = vmatpush.xpose.msra.mxu0 0.0
    %553 = vmatpush.xpose.msra.mxu0 0.0
    %554 = vmatpush.xpose.msra.mxu0 0.0
    %555 = vmatpush.xpose.msra.mxu0 0.0
    %556 = vmatpush.xpose.msra.mxu0 0.0
    %557 = vmatpush.xpose.msra.mxu0 0.0
    %558 = vmatpush.xpose.msra.mxu0 0.0
    %559 = vmatpush.xpose.msra.mxu0 0.0
    %560 = vmatpush.xpose.msra.mxu0 0.0
    %561 = vmatpush.xpose.msra.mxu0 %v544
    %562 = vmatmul.f32.gmra.mxu0 %v541
    %v563 = vpop.f32.mrf.mxu0
    %v564 = vadd.f32 %v197, %v563
    %565 = vdwg.mxu0
    %v566 = vsel %vm433, %v538, -inf
    %567 = vmax.xlane.f32.xlu0 %v566
    %v568 = vpop.xlane.xlu0 %567
    %v569 = vsel %vm433, %v564, -inf
    %570 = vmax.xlane.f32.xlu0 %v569
    %v571 = vpop.xlane.xlu0 %570
    %v572 = vsub.f32 %v538, %v568
    %v573 = vsub.f32 %v564, %v571
    %v574 = vmul.f32 %v572, 1.442695
    %v575 = vpow.pop %v574
    %v576 = vmul.f32 %v573, 1.442695
    %v577 = vpow.pop %v576
    %v578 = vsel %vm433, %v575, 0.0
    %579 = vadd.xlane.f32.xlu0 %v578
    %v580 = vpop.xlane.xlu0 %579
    %v581 = vsel %vm433, %v577, 0.0
    %582 = vadd.xlane.f32.xlu0 %v581
    %v583 = vpop.xlane.xlu0 %582
    %v584 = vrcp.pop %v580
    %v585 = vrcp.pop %v583
    %v586 = vmul.f32 %v575, %v584
    %v587 = vmul.f32 %v577, %v585
    %v589 = vsel %vm433, %v586, 0
    %591 = vmatpush.msra.mxu0 0.0
    %592 = vmatpush.msra.mxu0 0.0
    %593 = vmatpush.msra.mxu0 0.0
    %594 = vmatpush.msra.mxu0 0.0
    %595 = vmatpush.msra.mxu0 0.0
    %596 = vmatpush.msra.mxu0 0.0
    %597 = vmatpush.msra.mxu0 0.0
    %598 = vmatpush.msra.mxu0 0.0
    %599 = vmatpush.msra.mxu0 0.0
    %600 = vmatpush.msra.mxu0 0.0
    %601 = vmatpush.msra.mxu0 0.0
    %602 = vmatpush.msra.mxu0 0.0
    %603 = vmatpush.msra.mxu0 0.0
    %604 = vmatpush.msra.mxu0 0.0
    %605 = vmatpush.msra.mxu0 0.0
    %606 = vmatpush.msra.mxu0 %v512
    %607 = vmatmul.f32.gmra.mxu0 %v589
    %v608 = vpop.f32.mrf.mxu0
    %v609 = vadd.f32 0.0, %v608
    %610 = vdwg.mxu0
    %v612 = vsel %vm433, %v587, 0
    %614 = vmatpush.msra.mxu0 0.0
    %615 = vmatpush.msra.mxu0 0.0
    %616 = vmatpush.msra.mxu0 0.0
    %617 = vmatpush.msra.mxu0 0.0
    %618 = vmatpush.msra.mxu0 0.0
    %619 = vmatpush.msra.mxu0 0.0
    %620 = vmatpush.msra.mxu0 0.0
    %621 = vmatpush.msra.mxu0 0.0
    %622 = vmatpush.msra.mxu0 0.0
    %623 = vmatpush.msra.mxu0 0.0
    %624 = vmatpush.msra.mxu0 0.0
    %625 = vmatpush.msra.mxu0 0.0
    %626 = vmatpush.msra.mxu0 0.0
    %627 = vmatpush.msra.mxu0 0.0
    %628 = vmatpush.msra.mxu0 0.0
    %629 = vmatpush.msra.mxu0 %v513
    %630 = vmatmul.f32.gmra.mxu0 %v612
    %v631 = vpop.f32.mrf.mxu0
    %v632 = vadd.f32 0.0, %v631
    %633 = vdwg.mxu0
    %v634 = vld [vmem:[#allocation5 + $0xa0] sm:$0xff]
    %v635 = vld [vmem:[#allocation5 + $0xa8] sm:$0xff]
    %v636 = vld [vmem:[#allocation5 + $0xb0] sm:$0xff]
    %v637 = vld [vmem:[#allocation5 + $0xb8] sm:$0xff]
    %v639 = vsel %vm380, %v609, 0
    %v642 = vsel %vm380, %v632, 0
    %644 = vmatpush.msra.mxu0 0.0
    %645 = vmatpush.msra.mxu0 0.0
    %646 = vmatpush.msra.mxu0 0.0
    %647 = vmatpush.msra.mxu0 0.0
    %648 = vmatpush.msra.mxu0 0.0
    %649 = vmatpush.msra.mxu0 0.0
    %650 = vmatpush.msra.mxu0 0.0
    %651 = vmatpush.msra.mxu0 0.0
    %652 = vmatpush.msra.mxu0 0.0
    %653 = vmatpush.msra.mxu0 0.0
    %654 = vmatpush.msra.mxu0 0.0
    %655 = vmatpush.msra.mxu0 0.0
    %656 = vmatpush.msra.mxu0 0.0
    %657 = vmatpush.msra.mxu0 0.0
    %658 = vmatpush.msra.mxu0 %v637
    %659 = vmatpush.msra.mxu0 %v636
    %660 = vmatmul.f32.gmra.mxu0 %v639
    %v661 = vpop.f32.mrf.mxu0
    %v662 = vadd.f32 0.0, %v661
    %663 = vmatmul.f32.gmra.mxu0 %v642
    %v664 = vpop.f32.mrf.mxu0
    %v665 = vadd.f32 0.0, %v664
    %666 = vdwg.mxu0
    %v668 = vsel %vm380, %v477, 0
    %v671 = vsel %vm380, %v500, 0
    %673 = vmatpush.msra.mxu0 0.0
    %674 = vmatpush.msra.mxu0 0.0
    %675 = vmatpush.msra.mxu0 0.0
    %676 = vmatpush.msra.mxu0 0.0
    %677 = vmatpush.msra.mxu0 0.0
    %678 = vmatpush.msra.mxu0 0.0
    %679 = vmatpush.msra.mxu0 0.0
    %680 = vmatpush.msra.mxu0 0.0
    %681 = vmatpush.msra.mxu0 0.0
    %682 = vmatpush.msra.mxu0 0.0
    %683 = vmatpush.msra.mxu0 0.0
    %684 = vmatpush.msra.mxu0 0.0
    %685 = vmatpush.msra.mxu0 0.0
    %686 = vmatpush.msra.mxu0 0.0
    %687 = vmatpush.msra.mxu0 %v635
    %688 = vmatpush.msra.mxu0 %v634
    %689 = vmatmul.f32.gmra.mxu0 %v668
    %v690 = vpop.f32.mrf.mxu0
    %v691 = vadd.f32 %v662, %v690
    %692 = vmatmul.f32.gmra.mxu0 %v671
    %v693 = vpop.f32.mrf.mxu0
    %v694 = vadd.f32 %v665, %v693
    %695 = vdwg.mxu0
    %v696 = vld [vmem:[#allocation7 + $0x8] sm:$0x1]
    %v697 = vperm.slane %v696, 0
    %v698 = vadd.f32 %v691, %v697
    %v699 = vadd.f32 %v694, %v697
    %v700 = vadd.f32 %v698, %v188
    %v701 = vadd.f32 %v699, %v189
    %v702 = vld [vmem:[#allocation7 + $0x9] sm:$0x1]
    %v703 = vld [vmem:[#allocation7 + $0xa] sm:$0x1]
    %v704 = vsel %vm126, %v700, 0.0
    %705 = vadd.xlane.f32.xlu0 %v704
    %v706 = vpop.xlane.xlu0 %705
    %v707 = vsel %vm126, %v701, 0.0
    %708 = vadd.xlane.f32.xlu0 %v707
    %v709 = vpop.xlane.xlu0 %708
    %v710 = vmul.f32 %v706, %v139
    %v711 = vmul.f32 %v709, %v139
    %v712 = vmul.f32 %v700, %v700
    %v713 = vmul.f32 %v701, %v701
    %v714 = vsel %vm126, %v712, 0.0
    %715 = vadd.xlane.f32.xlu0 %v714
    %v716 = vpop.xlane.xlu0 %715
    %v717 = vsel %vm126, %v713, 0.0
    %718 = vadd.xlane.f32.xlu0 %v717
    %v719 = vpop.xlane.xlu0 %718
    %v720 = vmul.f32 %v716, %v139
    %v721 = vmul.f32 %v719, %v139
    %v722 = vmul.f32 %v710, %v710
    %v723 = vmul.f32 %v711, %v711
    %v724 = vsub.f32 %v720, %v722
    %v725 = vsub.f32 %v721, %v723
    %v726 = vmax.f32 %v724, 0.0
    %v727 = vmax.f32 %v725, 0.0
    %v728 = vsub.f32 %v700, %v710
    %v729 = vsub.f32 %v701, %v711
    %v730 = vadd.f32 %v726, 1e-12
    %v731 = vadd.f32 %v727, 1e-12
    %v732 = vrsqrt.pop %v730
    %v733 = vmul.f32 %v732, %v730
    %v734 = vmul.f32 %v733, %v732
    %v735 = vmul.f32 0.5, %v734
    %v736 = vsub.f32 1.5, %v735
    %v737 = vmul.f32 %v732, %v736
    %vm738 = vweird.f32 %v730
    %vm739 = vweird.f32 %v732
    %vm740 = vmor %vm738, %vm739
    %v741 = vsel %vm740, %v732, %v737
    %v742 = vrsqrt.pop %v731
    %v743 = vmul.f32 %v742, %v731
    %v744 = vmul.f32 %v743, %v742
    %v745 = vmul.f32 0.5, %v744
    %v746 = vsub.f32 1.5, %v745
    %v747 = vmul.f32 %v742, %v746
    %vm748 = vweird.f32 %v731
    %vm749 = vweird.f32 %v742
    %vm750 = vmor %vm748, %vm749
    %v751 = vsel %vm750, %v742, %v747
    %v752 = vmul.f32 %v728, %v741
    %v753 = vmul.f32 %v729, %v751
    %v754 = vperm.slane %v702, 0
    %v755 = vmul.f32 %v752, %v754
    %v756 = vmul.f32 %v753, %v754
    %v757 = vperm.slane %v703, 0
    %v758 = vadd.f32 %v755, %v757
    %v759 = vadd.f32 %v756, %v757
    %v760 = vld [vmem:[#allocation5 + $0xc0] sm:$0xff]
    %v761 = vld [vmem:[#allocation5 + $0xc8] sm:$0xff]
    %v762 = vld [vmem:[#allocation5 + $0xd0] sm:$0xff]
    %v763 = vld [vmem:[#allocation5 + $0xd8] sm:$0xff]
    %v764 = vld [vmem:[#allocation7 + $0xb] sm:$0x1]
    %v765 = vperm.slane %v764, 0
    %v767 = vsel %vm126, %v758, 0
    %v770 = vsel %vm126, %v759, 0
    %772 = vmatpush.msra.mxu0 0.0
    %773 = vmatpush.msra.mxu0 0.0
    %774 = vmatpush.msra.mxu0 0.0
    %775 = vmatpush.msra.mxu0 0.0
    %776 = vmatpush.msra.mxu0 0.0
    %777 = vmatpush.msra.mxu0 0.0
    %778 = vmatpush.msra.mxu0 0.0
    %779 = vmatpush.msra.mxu0 0.0
    %780 = vmatpush.msra.mxu0 0.0
    %781 = vmatpush.msra.mxu0 0.0
    %782 = vmatpush.msra.mxu0 0.0
    %783 = vmatpush.msra.mxu0 0.0
    %784 = vmatpush.msra.mxu0 %v763
    %785 = vmatpush.msra.mxu0 %v762
    %786 = vmatpush.msra.mxu0 %v761
    %787 = vmatpush.msra.mxu0 %v760
    %788 = vmatmul.f32.gmra.mxu0 %v767
    %v789 = vpop.f32.mrf.mxu0
    %v790 = vadd.f32 %v765, %v789
    %791 = vmatmul.f32.gmra.mxu0 %v770
    %v792 = vpop.f32.mrf.mxu0
    %v793 = vadd.f32 %v765, %v792
    %794 = vdwg.mxu0
    %v795 = vmul.f32 %v790, %v790
    %v796 = vmul.f32 %v793, %v793
    %v797 = vmul.f32 %v790, %v795
    %v798 = vmul.f32 %v793, %v796
    %v799 = vmul.f32 %v797, 0.044715
    %v800 = vmul.f32 %v798, 0.044715
    %v801 = vadd.f32 %v790, %v799
    %v802 = vadd.f32 %v793, %v800
    %v803 = vmul.f32 %v801, 0.7978846
    %v804 = vmul.f32 %v802, 0.7978846
    %v805 = vtanh.pop %v803
    %v806 = vtanh.pop %v804
    %v807 = vadd.f32 %v805, 1.0
    %v808 = vadd.f32 %v806, 1.0
    %v809 = vmul.f32 %v807, 0.5
    %v810 = vmul.f32 %v808, 0.5
    %v811 = vmul.f32 %v790, %v809
    %v812 = vmul.f32 %v793, %v810
    %v813 = vld [vmem:[#allocation5 + $0xe0] sm:$0xff]
    %v814 = vld [vmem:[#allocation5 + $0xe8] sm:$0xff]
    %v815 = vld [vmem:[#allocation5 + $0xf0] sm:$0xff]
    %v816 = vld [vmem:[#allocation5 + $0xf8] sm:$0xff]
    %v817 = vld [vmem:[#allocation5 + $0x100] sm:$0xff]
    %v818 = vld [vmem:[#allocation5 + $0x108] sm:$0xff]
    %v819 = vld [vmem:[#allocation5 + $0x110] sm:$0xff]
    %v820 = vld [vmem:[#allocation5 + $0x118] sm:$0xff]
    %v821 = vld [vmem:[#allocation7 + $0xc] sm:$0x1]
    %v822 = vperm.slane %v821, 0
    %vm823 = vcmask 523264
    %v825 = vsel %vm823, %v811, 0
    %v828 = vsel %vm823, %v812, 0
    %830 = vmatpush.msra.mxu0 0.0
    %831 = vmatpush.msra.mxu0 0.0
    %832 = vmatpush.msra.mxu0 0.0
    %833 = vmatpush.msra.mxu0 0.0
    %834 = vmatpush.msra.mxu0 0.0
    %835 = vmatpush.msra.mxu0 0.0
    %836 = vmatpush.msra.mxu0 0.0
    %837 = vmatpush.msra.mxu0 0.0
    %838 = vmatpush.msra.mxu0 %v820
    %839 = vmatpush.msra.mxu0 %v819
    %840 = vmatpush.msra.mxu0 %v818
    %841 = vmatpush.msra.mxu0 %v817
    %842 = vmatpush.msra.mxu0 %v816
    %843 = vmatpush.msra.mxu0 %v815
    %844 = vmatpush.msra.mxu0 %v814
    %845 = vmatpush.msra.mxu0 %v813
    %846 = vmatmul.f32.gmra.mxu0 %v825
    %v847 = vpop.f32.mrf.mxu0
    %v848 = vadd.f32 %v822, %v847
    %849 = vmatmul.f32.gmra.mxu0 %v828
    %v850 = vpop.f32.mrf.mxu0
    %v851 = vadd.f32 %v822, %v850
    %852 = vdwg.mxu0
    %v853 = vadd.f32 %v848, %v758
    %v854 = vadd.f32 %v851, %v759
    %v855 = vld [vmem:[#allocation7 + $0xd] sm:$0x1]
    %v856 = vld [vmem:[#allocation7 + $0xe] sm:$0x1]
    %v857 = vsel %vm126, %v853, 0.0
    %858 = vadd.xlane.f32.xlu0 %v857
    %v859 = vpop.xlane.xlu0 %858
    %v860 = vsel %vm126, %v854, 0.0
    %861 = vadd.xlane.f32.xlu0 %v860
    %v862 = vpop.xlane.xlu0 %861
    %v863 = vmul.f32 %v859, %v139
    %v864 = vmul.f32 %v862, %v139
    %v865 = vmul.f32 %v853, %v853
    %v866 = vmul.f32 %v854, %v854
    %v867 = vsel %vm126, %v865, 0.0
    %868 = vadd.xlane.f32.xlu0 %v867
    %v869 = vpop.xlane.xlu0 %868
    %v870 = vsel %vm126, %v866, 0.0
    %871 = vadd.xlane.f32.xlu0 %v870
    %v872 = vpop.xlane.xlu0 %871
    %v873 = vmul.f32 %v869, %v139
    %v874 = vmul.f32 %v872, %v139
    %v875 = vmul.f32 %v863, %v863
    %v876 = vmul.f32 %v864, %v864
    %v877 = vsub.f32 %v873, %v875
    %v878 = vsub.f32 %v874, %v876
    %v879 = vmax.f32 %v877, 0.0
    %v880 = vmax.f32 %v878, 0.0
    %v881 = vsub.f32 %v853, %v863
    %v882 = vsub.f32 %v854, %v864
    %v883 = vadd.f32 %v879, 1e-12
    %v884 = vadd.f32 %v880, 1e-12
    %v885 = vrsqrt.pop %v883
    %v886 = vmul.f32 %v885, %v883
    %v887 = vmul.f32 %v886, %v885
    %v888 = vmul.f32 0.5, %v887
    %v889 = vsub.f32 1.5, %v888
    %v890 = vmul.f32 %v885, %v889
    %vm891 = vweird.f32 %v883
    %vm892 = vweird.f32 %v885
    %vm893 = vmor %vm891, %vm892
    %v894 = vsel %vm893, %v885, %v890
    %v895 = vrsqrt.pop %v884
    %v896 = vmul.f32 %v895, %v884
    %v897 = vmul.f32 %v896, %v895
    %v898 = vmul.f32 0.5, %v897
    %v899 = vsub.f32 1.5, %v898
    %v900 = vmul.f32 %v895, %v899
    %vm901 = vweird.f32 %v884
    %vm902 = vweird.f32 %v895
    %vm903 = vmor %vm901, %vm902
    %v904 = vsel %vm903, %v895, %v900
    %v905 = vmul.f32 %v881, %v894
    %v906 = vmul.f32 %v882, %v904
    %v907 = vperm.slane %v855, 0
    %v908 = vmul.f32 %v905, %v907
    %v909 = vmul.f32 %v906, %v907
    %v910 = vperm.slane %v856, 0
    %v911 = vadd.f32 %v908, %v910
    %v912 = vadd.f32 %v909, %v910
    %v913 = vld [vmem:[#allocation2 + $0xc0] sm:$0xff]
    %v914 = vld [vmem:[#allocation2 + $0xc8] sm:$0xff]
    %v915 = vld [vmem:[#allocation2 + $0xd0] sm:$0xff]
    %v916 = vld [vmem:[#allocation2 + $0xd8] sm:$0xff]
    %v917 = vld [vmem:[#allocation2 + $0xe0] sm:$0xff]
    %v918 = vld [vmem:[#allocation2 + $0xe8] sm:$0xff]
    %v919 = vld [vmem:[#allocation2 + $0xf0] sm:$0xff]
    %v920 = vld [vmem:[#allocation2 + $0xf8] sm:$0xff]
    %v921 = vld [vmem:[#allocation2 + $0x100] sm:$0xff]
    %v922 = vld [vmem:[#allocation2 + $0x108] sm:$0xff]
    %v923 = vld [vmem:[#allocation2 + $0x110] sm:$0xff]
    %v924 = vld [vmem:[#allocation2 + $0x118] sm:$0xff]
    %v925 = vld [vmem:[#allocation2 + $0x120] sm:$0xff]
    %v926 = vld [vmem:[#allocation2 + $0x128] sm:$0xff]
    %v927 = vld [vmem:[#allocation2 + $0x130] sm:$0xff]
    %v928 = vld [vmem:[#allocation2 + $0x138] sm:$0xff]
    %v929 = vld [vmem:[#allocation2 + $0x140] sm:$0xff]
    %v930 = vld [vmem:[#allocation2 + $0x148] sm:$0xff]
    %v931 = vld [vmem:[#allocation2 + $0x150] sm:$0xff]
    %v932 = vld [vmem:[#allocation2 + $0x158] sm:$0xff]
    %v933 = vld [vmem:[#allocation2 + $0x160] sm:$0xff]
    %v934 = vld [vmem:[#allocation2 + $0x168] sm:$0xff]
    %v935 = vld [vmem:[#allocation2 + $0x170] sm:$0xff]
    %v936 = vld [vmem:[#allocation2 + $0x178] sm:$0xff]
    %v938 = vsel %vm126, %v911, 0
    %v941 = vsel %vm126, %v912, 0
    %943 = vmatpush.msra.mxu0 0.0
    %944 = vmatpush.msra.mxu0 0.0
    %945 = vmatpush.msra.mxu0 0.0
    %946 = vmatpush.msra.mxu0 0.0
    %947 = vmatpush.msra.mxu0 0.0
    %948 = vmatpush.msra.mxu0 0.0
    %949 = vmatpush.msra.mxu0 0.0
    %950 = vmatpush.msra.mxu0 0.0
    %951 = vmatpush.msra.mxu0 0.0
    %952 = vmatpush.msra.mxu0 0.0
    %953 = vmatpush.msra.mxu0 0.0
    %954 = vmatpush.msra.mxu0 0.0
    %955 = vmatpush.msra.mxu0 %v931
    %956 = vmatpush.msra.mxu0 %v925
    %957 = vmatpush.msra.mxu0 %v919
    %958 = vmatpush.msra.mxu0 %v913
    %959 = vmatmul.f32.gmra.mxu0 %v938
    %v960 = vpop.f32.mrf.mxu0
    %v961 = vadd.f32 0.0, %v960
    %962 = vmatmul.f32.gmra.mxu0 %v941
    %v963 = vpop.f32.mrf.mxu0
    %v964 = vadd.f32 0.0, %v963
    %965 = vdwg.mxu0
    %966 = vmatpush.msra.mxu0 0.0
    %967 = vmatpush.msra.mxu0 0.0
    %968 = vmatpush.msra.mxu0 0.0
    %969 = vmatpush.msra.mxu0 0.0
    %970 = vmatpush.msra.mxu0 0.0
    %971 = vmatpush.msra.mxu0 0.0
    %972 = vmatpush.msra.mxu0 0.0
    %973 = vmatpush.msra.mxu0 0.0
    %974 = vmatpush.msra.mxu0 0.0
    %975 = vmatpush.msra.mxu0 0.0
    %976 = vmatpush.msra.mxu0 0.0
    %977 = vmatpush.msra.mxu0 0.0
    %978 = vmatpush.msra.mxu0 %v932
    %979 = vmatpush.msra.mxu0 %v926
    %980 = vmatpush.msra.mxu0 %v920
    %981 = vmatpush.msra.mxu0 %v914
    %982 = vmatmul.f32.gmra.mxu0 %v938
    %v983 = vpop.f32.mrf.mxu0
    %v984 = vadd.f32 0.0, %v983
    %985 = vmatmul.f32.gmra.mxu0 %v941
    %v986 = vpop.f32.mrf.mxu0
    %v987 = vadd.f32 0.0, %v986
    %988 = vdwg.mxu0
    %989 = vmatpush.msra.mxu0 0.0
    %990 = vmatpush.msra.mxu0 0.0
    %991 = vmatpush.msra.mxu0 0.0
    %992 = vmatpush.msra.mxu0 0.0
    %993 = vmatpush.msra.mxu0 0.0
    %994 = vmatpush.msra.mxu0 0.0
    %995 = vmatpush.msra.mxu0 0.0
    %996 = vmatpush.msra.mxu0 0.0
    %997 = vmatpush.msra.mxu0 0.0
    %998 = vmatpush.msra.mxu0 0.0
    %999 = vmatpush.msra.mxu0 0.0
    %1000 = vmatpush.msra.mxu0 0.0
    %1001 = vmatpush.msra.mxu0 %v933
    %1002 = vmatpush.msra.mxu0 %v927
    %1003 = vmatpush.msra.mxu0 %v921
    %1004 = vmatpush.msra.mxu0 %v915
    %1005 = vmatmul.f32.gmra.mxu0 %v938
    %v1006 = vpop.f32.mrf.mxu0
    %v1007 = vadd.f32 0.0, %v1006
    %1008 = vmatmul.f32.gmra.mxu0 %v941
    %v1009 = vpop.f32.mrf.mxu0
    %v1010 = vadd.f32 0.0, %v1009
    %1011 = vdwg.mxu0
    %1012 = vmatpush.msra.mxu0 0.0
    %1013 = vmatpush.msra.mxu0 0.0
    %1014 = vmatpush.msra.mxu0 0.0
    %1015 = vmatpush.msra.mxu0 0.0
    %1016 = vmatpush.msra.mxu0 0.0
    %1017 = vmatpush.msra.mxu0 0.0
    %1018 = vmatpush.msra.mxu0 0.0
    %1019 = vmatpush.msra.mxu0 0.0
    %1020 = vmatpush.msra.mxu0 0.0
    %1021 = vmatpush.msra.mxu0 0.0
    %1022 = vmatpush.msra.mxu0 0.0
    %1023 = vmatpush.msra.mxu0 0.0
    %1024 = vmatpush.msra.mxu0 %v934
    %1025 = vmatpush.msra.mxu0 %v928
    %1026 = vmatpush.msra.mxu0 %v922
    %1027 = vmatpush.msra.mxu0 %v916
    %1028 = vmatmul.f32.gmra.mxu0 %v938
    %v1029 = vpop.f32.mrf.mxu0
    %v1030 = vadd.f32 0.0, %v1029
    %1031 = vmatmul.f32.gmra.mxu0 %v941
    %v1032 = vpop.f32.mrf.mxu0
    %v1033 = vadd.f32 0.0, %v1032
    %1034 = vdwg.mxu0
    %1035 = vmatpush.msra.mxu0 0.0
    %1036 = vmatpush.msra.mxu0 0.0
    %1037 = vmatpush.msra.mxu0 0.0
    %1038 = vmatpush.msra.mxu0 0.0
    %1039 = vmatpush.msra.mxu0 0.0
    %1040 = vmatpush.msra.mxu0 0.0
    %1041 = vmatpush.msra.mxu0 0.0
    %1042 = vmatpush.msra.mxu0 0.0
    %1043 = vmatpush.msra.mxu0 0.0
    %1044 = vmatpush.msra.mxu0 0.0
    %1045 = vmatpush.msra.mxu0 0.0
    %1046 = vmatpush.msra.mxu0 0.0
    %1047 = vmatpush.msra.mxu0 %v935
    %1048 = vmatpush.msra.mxu0 %v929
    %1049 = vmatpush.msra.mxu0 %v923
    %1050 = vmatpush.msra.mxu0 %v917
    %1051 = vmatmul.f32.gmra.mxu0 %v938
    %v1052 = vpop.f32.mrf.mxu0
    %v1053 = vadd.f32 0.0, %v1052
    %1054 = vmatmul.f32.gmra.mxu0 %v941
    %v1055 = vpop.f32.mrf.mxu0
    %v1056 = vadd.f32 0.0, %v1055
    %1057 = vdwg.mxu0
    %1058 = vmatpush.msra.mxu0 0.0
    %1059 = vmatpush.msra.mxu0 0.0
    %1060 = vmatpush.msra.mxu0 0.0
    %1061 = vmatpush.msra.mxu0 0.0
    %1062 = vmatpush.msra.mxu0 0.0
    %1063 = vmatpush.msra.mxu0 0.0
    %1064 = vmatpush.msra.mxu0 0.0
    %1065 = vmatpush.msra.mxu0 0.0
    %1066 = vmatpush.msra.mxu0 0.0
    %1067 = vmatpush.msra.mxu0 0.0
    %1068 = vmatpush.msra.mxu0 0.0
    %1069 = vmatpush.msra.mxu0 0.0
    %1070 = vmatpush.msra.mxu0 %v936
    %1071 = vmatpush.msra.mxu0 %v930
    %1072 = vmatpush.msra.mxu0 %v924
    %1073 = vmatpush.msra.mxu0 %v918
    %1074 = vmatmul.f32.gmra.mxu0 %v938
    %v1075 = vpop.f32.mrf.mxu0
    %v1076 = vadd.f32 0.0, %v1075
    %1077 = vmatmul.f32.gmra.mxu0 %v941
    %v1078 = vpop.f32.mrf.mxu0
    %v1079 = vadd.f32 0.0, %v1078
    %1080 = vdwg.mxu0
    %v1081 = vld [vmem:[#allocation7 + $0xf] sm:$0x1]
    %v1082 = vperm.slane %v1081, 0
    %v1083 = vadd.f32 %v961, %v1082
    %v1084 = vadd.f32 %v964, %v1082
    %v1085 = vld [vmem:[#allocation7 + $0x10] sm:$0x1]
    %v1086 = vperm.slane %v1085, 0
    %v1087 = vadd.f32 %v984, %v1086
    %v1088 = vadd.f32 %v987, %v1086
    %v1089 = vld [vmem:[#allocation7 + $0x11] sm:$0x1]
    %v1090 = vperm.slane %v1089, 0
    %v1091 = vadd.f32 %v1007, %v1090
    %v1092 = vadd.f32 %v1010, %v1090
    %v1094 = vsel %vm380, %v1083, 0
    %v1097 = vsel %vm380, %v1087, 0
    %1099 = vmatpush.xpose.msra.mxu0 0.0
    %1100 = vmatpush.xpose.msra.mxu0 0.0
    %1101 = vmatpush.xpose.msra.mxu0 0.0
    %1102 = vmatpush.xpose.msra.mxu0 0.0
    %1103 = vmatpush.xpose.msra.mxu0 0.0
    %1104 = vmatpush.xpose.msra.mxu0 0.0
    %1105 = vmatpush.xpose.msra.mxu0 0.0
    %1106 = vmatpush.xpose.msra.mxu0 0.0
    %1107 = vmatpush.xpose.msra.mxu0 0.0
    %1108 = vmatpush.xpose.msra.mxu0 0.0
    %1109 = vmatpush.xpose.msra.mxu0 0.0
    %1110 = vmatpush.xpose.msra.mxu0 0.0
    %1111 = vmatpush.xpose.msra.mxu0 0.0
    %1112 = vmatpush.xpose.msra.mxu0 0.0
    %1113 = vmatpush.xpose.msra.mxu0 0.0
    %1114 = vmatpush.xpose.msra.mxu0 %v1097
    %1115 = vmatmul.f32.gmra.mxu0 %v1094
    %v1116 = vpop.f32.mrf.mxu0
    %v1117 = vadd.f32 %v196, %v1116
    %1118 = vdwg.mxu0
    %v1120 = vsel %vm380, %v1084, 0
    %v1123 = vsel %vm380, %v1088, 0
    %1125 = vmatpush.xpose.msra.mxu0 0.0
    %1126 = vmatpush.xpose.msra.mxu0 0.0
    %1127 = vmatpush.xpose.msra.mxu0 0.0
    %1128 = vmatpush.xpose.msra.mxu0 0.0
    %1129 = vmatpush.xpose.msra.mxu0 0.0
    %1130 = vmatpush.xpose.msra.mxu0 0.0
    %1131 = vmatpush.xpose.msra.mxu0 0.0
    %1132 = vmatpush.xpose.msra.mxu0 0.0
    %1133 = vmatpush.xpose.msra.mxu0 0.0
    %1134 = vmatpush.xpose.msra.mxu0 0.0
    %1135 = vmatpush.xpose.msra.mxu0 0.0
    %1136 = vmatpush.xpose.msra.mxu0 0.0
    %1137 = vmatpush.xpose.msra.mxu0 0.0
    %1138 = vmatpush.xpose.msra.mxu0 0.0
    %1139 = vmatpush.xpose.msra.mxu0 0.0
    %1140 = vmatpush.xpose.msra.mxu0 %v1123
    %1141 = vmatmul.f32.gmra.mxu0 %v1120
    %v1142 = vpop.f32.mrf.mxu0
    %v1143 = vadd.f32 %v197, %v1142
    %1144 = vdwg.mxu0
    %v1145 = vsel %vm433, %v1117, -inf
    %1146 = vmax.xlane.f32.xlu0 %v1145
    %v1147 = vpop.xlane.xlu0 %1146
    %v1148 = vsel %vm433, %v1143, -inf
    %1149 = vmax.xlane.f32.xlu0 %v1148
    %v1150 = vpop.xlane.xlu0 %1149
    %v1151 = vsub.f32 %v1117, %v1147
    %v1152 = vsub.f32 %v1143, %v1150
    %v1153 = vmul.f32 %v1151, 1.442695
    %v1154 = vpow.pop %v1153
    %v1155 = vmul.f32 %v1152, 1.442695
    %v1156 = vpow.pop %v1155
    %v1157 = vsel %vm433, %v1154, 0.0
    %1158 = vadd.xlane.f32.xlu0 %v1157
    %v1159 = vpop.xlane.xlu0 %1158
    %v1160 = vsel %vm433, %v1156, 0.0
    %1161 = vadd.xlane.f32.xlu0 %v1160
    %v1162 = vpop.xlane.xlu0 %1161
    %v1163 = vrcp.pop %v1159
    %v1164 = vrcp.pop %v1162
    %v1165 = vmul.f32 %v1154, %v1163
    %v1166 = vmul.f32 %v1156, %v1164
    %v1168 = vsel %vm433, %v1165, 0
    %1170 = vmatpush.msra.mxu0 0.0
    %1171 = vmatpush.msra.mxu0 0.0
    %1172 = vmatpush.msra.mxu0 0.0
    %1173 = vmatpush.msra.mxu0 0.0
    %1174 = vmatpush.msra.mxu0 0.0
    %1175 = vmatpush.msra.mxu0 0.0
    %1176 = vmatpush.msra.mxu0 0.0
    %1177 = vmatpush.msra.mxu0 0.0
    %1178 = vmatpush.msra.mxu0 0.0
    %1179 = vmatpush.msra.mxu0 0.0
    %1180 = vmatpush.msra.mxu0 0.0
    %1181 = vmatpush.msra.mxu0 0.0
    %1182 = vmatpush.msra.mxu0 0.0
    %1183 = vmatpush.msra.mxu0 0.0
    %1184 = vmatpush.msra.mxu0 0.0
    %1185 = vmatpush.msra.mxu0 %v1091
    %1186 = vmatmul.f32.gmra.mxu0 %v1168
    %v1187 = vpop.f32.mrf.mxu0
    %v1188 = vadd.f32 0.0, %v1187
    %1189 = vdwg.mxu0
    %v1191 = vsel %vm433, %v1166, 0
    %1193 = vmatpush.msra.mxu0 0.0
    %1194 = vmatpush.msra.mxu0 0.0
    %1195 = vmatpush.msra.mxu0 0.0
    %1196 = vmatpush.msra.mxu0 0.0
    %1197 = vmatpush.msra.mxu0 0.0
    %1198 = vmatpush.msra.mxu0 0.0
    %1199 = vmatpush.msra.mxu0 0.0
    %1200 = vmatpush.msra.mxu0 0.0
    %1201 = vmatpush.msra.mxu0 0.0
    %1202 = vmatpush.msra.mxu0 0.0
    %1203 = vmatpush.msra.mxu0 0.0
    %1204 = vmatpush.msra.mxu0 0.0
    %1205 = vmatpush.msra.mxu0 0.0
    %1206 = vmatpush.msra.mxu0 0.0
    %1207 = vmatpush.msra.mxu0 0.0
    %1208 = vmatpush.msra.mxu0 %v1092
    %1209 = vmatmul.f32.gmra.mxu0 %v1191
    %v1210 = vpop.f32.mrf.mxu0
    %v1211 = vadd.f32 0.0, %v1210
    %1212 = vdwg.mxu0
    %v1213 = vld [vmem:[#allocation7 + $0x12] sm:$0x1]
    %v1214 = vperm.slane %v1213, 0
    %v1215 = vadd.f32 %v1030, %v1214
    %v1216 = vadd.f32 %v1033, %v1214
    %v1217 = vld [vmem:[#allocation7 + $0x13] sm:$0x1]
    %v1218 = vperm.slane %v1217, 0
    %v1219 = vadd.f32 %v1053, %v1218
    %v1220 = vadd.f32 %v1056, %v1218
    %v1221 = vld [vmem:[#allocation7 + $0x14] sm:$0x1]
    %v1222 = vperm.slane %v1221, 0
    %v1223 = vadd.f32 %v1076, %v1222
    %v1224 = vadd.f32 %v1079, %v1222
    %v1226 = vsel %vm380, %v1215, 0
    %v1229 = vsel %vm380, %v1219, 0
    %1231 = vmatpush.xpose.msra.mxu0 0.0
    %1232 = vmatpush.xpose.msra.mxu0 0.0
    %1233 = vmatpush.xpose.msra.mxu0 0.0
    %1234 = vmatpush.xpose.msra.mxu0 0.0
    %1235 = vmatpush.xpose.msra.mxu0 0.0
    %1236 = vmatpush.xpose.msra.mxu0 0.0
    %1237 = vmatpush.xpose.msra.mxu0 0.0
    %1238 = vmatpush.xpose.msra.mxu0 0.0
    %1239 = vmatpush.xpose.msra.mxu0 0.0
    %1240 = vmatpush.xpose.msra.mxu0 0.0
    %1241 = vmatpush.xpose.msra.mxu0 0.0
    %1242 = vmatpush.xpose.msra.mxu0 0.0
    %1243 = vmatpush.xpose.msra.mxu0 0.0
    %1244 = vmatpush.xpose.msra.mxu0 0.0
    %1245 = vmatpush.xpose.msra.mxu0 0.0
    %1246 = vmatpush.xpose.msra.mxu0 %v1229
    %1247 = vmatmul.f32.gmra.mxu0 %v1226
    %v1248 = vpop.f32.mrf.mxu0
    %v1249 = vadd.f32 %v196, %v1248
    %1250 = vdwg.mxu0
    %v1252 = vsel %vm380, %v1216, 0
    %v1255 = vsel %vm380, %v1220, 0
    %1257 = vmatpush.xpose.msra.mxu0 0.0
    %1258 = vmatpush.xpose.msra.mxu0 0.0
    %1259 = vmatpush.xpose.msra.mxu0 0.0
    %1260 = vmatpush.xpose.msra.mxu0 0.0
    %1261 = vmatpush.xpose.msra.mxu0 0.0
    %1262 = vmatpush.xpose.msra.mxu0 0.0
    %1263 = vmatpush.xpose.msra.mxu0 0.0
    %1264 = vmatpush.xpose.msra.mxu0 0.0
    %1265 = vmatpush.xpose.msra.mxu0 0.0
    %1266 = vmatpush.xpose.msra.mxu0 0.0
    %1267 = vmatpush.xpose.msra.mxu0 0.0
    %1268 = vmatpush.xpose.msra.mxu0 0.0
    %1269 = vmatpush.xpose.msra.mxu0 0.0
    %1270 = vmatpush.xpose.msra.mxu0 0.0
    %1271 = vmatpush.xpose.msra.mxu0 0.0
    %1272 = vmatpush.xpose.msra.mxu0 %v1255
    %1273 = vmatmul.f32.gmra.mxu0 %v1252
    %v1274 = vpop.f32.mrf.mxu0
    %v1275 = vadd.f32 %v197, %v1274
    %1276 = vdwg.mxu0
    %v1277 = vsel %vm433, %v1249, -inf
    %1278 = vmax.xlane.f32.xlu0 %v1277
    %v1279 = vpop.xlane.xlu0 %1278
    %v1280 = vsel %vm433, %v1275, -inf
    %1281 = vmax.xlane.f32.xlu0 %v1280
    %v1282 = vpop.xlane.xlu0 %1281
    %v1283 = vsub.f32 %v1249, %v1279
    %v1284 = vsub.f32 %v1275, %v1282
    %v1285 = vmul.f32 %v1283, 1.442695
    %v1286 = vpow.pop %v1285
    %v1287 = vmul.f32 %v1284, 1.442695
    %v1288 = vpow.pop %v1287
    %v1289 = vsel %vm433, %v1286, 0.0
    %1290 = vadd.xlane.f32.xlu0 %v1289
    %v1291 = vpop.xlane.xlu0 %1290
    %v1292 = vsel %vm433, %v1288, 0.0
    %1293 = vadd.xlane.f32.xlu0 %v1292
    %v1294 = vpop.xlane.xlu0 %1293
    %v1295 = vrcp.pop %v1291
    %v1296 = vrcp.pop %v1294
    %v1297 = vmul.f32 %v1286, %v1295
    %v1298 = vmul.f32 %v1288, %v1296
    %v1300 = vsel %vm433, %v1297, 0
    %1302 = vmatpush.msra.mxu0 0.0
    %1303 = vmatpush.msra.mxu0 0.0
    %1304 = vmatpush.msra.mxu0 0.0
    %1305 = vmatpush.msra.mxu0 0.0
    %1306 = vmatpush.msra.mxu0 0.0
    %1307 = vmatpush.msra.mxu0 0.0
    %1308 = vmatpush.msra.mxu0 0.0
    %1309 = vmatpush.msra.mxu0 0.0
    %1310 = vmatpush.msra.mxu0 0.0
    %1311 = vmatpush.msra.mxu0 0.0
    %1312 = vmatpush.msra.mxu0 0.0
    %1313 = vmatpush.msra.mxu0 0.0
    %1314 = vmatpush.msra.mxu0 0.0
    %1315 = vmatpush.msra.mxu0 0.0
    %1316 = vmatpush.msra.mxu0 0.0
    %1317 = vmatpush.msra.mxu0 %v1223
    %1318 = vmatmul.f32.gmra.mxu0 %v1300
    %v1319 = vpop.f32.mrf.mxu0
    %v1320 = vadd.f32 0.0, %v1319
    %1321 = vdwg.mxu0
    %v1323 = vsel %vm433, %v1298, 0
    %1325 = vmatpush.msra.mxu0 0.0
    %1326 = vmatpush.msra.mxu0 0.0
    %1327 = vmatpush.msra.mxu0 0.0
    %1328 = vmatpush.msra.mxu0 0.0
    %1329 = vmatpush.msra.mxu0 0.0
    %1330 = vmatpush.msra.mxu0 0.0
    %1331 = vmatpush.msra.mxu0 0.0
    %1332 = vmatpush.msra.mxu0 0.0
    %1333 = vmatpush.msra.mxu0 0.0
    %1334 = vmatpush.msra.mxu0 0.0
    %1335 = vmatpush.msra.mxu0 0.0
    %1336 = vmatpush.msra.mxu0 0.0
    %1337 = vmatpush.msra.mxu0 0.0
    %1338 = vmatpush.msra.mxu0 0.0
    %1339 = vmatpush.msra.mxu0 0.0
    %1340 = vmatpush.msra.mxu0 %v1224
    %1341 = vmatmul.f32.gmra.mxu0 %v1323
    %v1342 = vpop.f32.mrf.mxu0
    %v1343 = vadd.f32 0.0, %v1342
    %1344 = vdwg.mxu0
    %v1345 = vld [vmem:[#allocation5 + $0x120] sm:$0xff]
    %v1346 = vld [vmem:[#allocation5 + $0x128] sm:$0xff]
    %v1347 = vld [vmem:[#allocation5 + $0x130] sm:$0xff]
    %v1348 = vld [vmem:[#allocation5 + $0x138] sm:$0xff]
    %v1350 = vsel %vm380, %v1320, 0
    %v1353 = vsel %vm380, %v1343, 0
    %1355 = vmatpush.msra.mxu0 0.0
    %1356 = vmatpush.msra.mxu0 0.0
    %1357 = vmatpush.msra.mxu0 0.0
    %1358 = vmatpush.msra.mxu0 0.0
    %1359 = vmatpush.msra.mxu0 0.0
    %1360 = vmatpush.msra.mxu0 0.0
    %1361 = vmatpush.msra.mxu0 0.0
    %1362 = vmatpush.msra.mxu0 0.0
    %1363 = vmatpush.msra.mxu0 0.0
    %1364 = vmatpush.msra.mxu0 0.0
    %1365 = vmatpush.msra.mxu0 0.0
    %1366 = vmatpush.msra.mxu0 0.0
    %1367 = vmatpush.msra.mxu0 0.0
    %1368 = vmatpush.msra.mxu0 0.0
    %1369 = vmatpush.msra.mxu0 %v1348
    %1370 = vmatpush.msra.mxu0 %v1347
    %1371 = vmatmul.f32.gmra.mxu0 %v1350
    %v1372 = vpop.f32.mrf.mxu0
    %v1373 = vadd.f32 0.0, %v1372
    %1374 = vmatmul.f32.gmra.mxu0 %v1353
    %v1375 = vpop.f32.mrf.mxu0
    %v1376 = vadd.f32 0.0, %v1375
    %1377 = vdwg.mxu0
    %v1379 = vsel %vm380, %v1188, 0
    %v1382 = vsel %vm380, %v1211, 0
    %1384 = vmatpush.msra.mxu0 0.0
    %1385 = vmatpush.msra.mxu0 0.0
    %1386 = vmatpush.msra.mxu0 0.0
    %1387 = vmatpush.msra.mxu0 0.0
    %1388 = vmatpush.msra.mxu0 0.0
    %1389 = vmatpush.msra.mxu0 0.0
    %1390 = vmatpush.msra.mxu0 0.0
    %1391 = vmatpush.msra.mxu0 0.0
    %1392 = vmatpush.msra.mxu0 0.0
    %1393 = vmatpush.msra.mxu0 0.0
    %1394 = vmatpush.msra.mxu0 0.0
    %1395 = vmatpush.msra.mxu0 0.0
    %1396 = vmatpush.msra.mxu0 0.0
    %1397 = vmatpush.msra.mxu0 0.0
    %1398 = vmatpush.msra.mxu0 %v1346
    %1399 = vmatpush.msra.mxu0 %v1345
    %1400 = vmatmul.f32.gmra.mxu0 %v1379
    %v1401 = vpop.f32.mrf.mxu0
    %v1402 = vadd.f32 %v1373, %v1401
    %1403 = vmatmul.f32.gmra.mxu0 %v1382
    %v1404 = vpop.f32.mrf.mxu0
    %v1405 = vadd.f32 %v1376, %v1404
    %1406 = vdwg.mxu0
    %v1407 = vld [vmem:[#allocation7 + $0x15] sm:$0x1]
    %v1408 = vperm.slane %v1407, 0
    %v1409 = vadd.f32 %v1402, %v1408
    %v1410 = vadd.f32 %v1405, %v1408
    %v1411 = vadd.f32 %v1409, %v911
    %v1412 = vadd.f32 %v1410, %v912
    %v1413 = vld [vmem:[#allocation7 + $0x16] sm:$0x1]
    %v1414 = vld [vmem:[#allocation7 + $0x17] sm:$0x1]
    %v1415 = vsel %vm126, %v1411, 0.0
    %1416 = vadd.xlane.f32.xlu0 %v1415
    %v1417 = vpop.xlane.xlu0 %1416
    %v1418 = vsel %vm126, %v1412, 0.0
    %1419 = vadd.xlane.f32.xlu0 %v1418
    %v1420 = vpop.xlane.xlu0 %1419
    %v1421 = vmul.f32 %v1417, %v139
    %v1422 = vmul.f32 %v1420, %v139
    %v1423 = vmul.f32 %v1411, %v1411
    %v1424 = vmul.f32 %v1412, %v1412
    %v1425 = vsel %vm126, %v1423, 0.0
    %1426 = vadd.xlane.f32.xlu0 %v1425
    %v1427 = vpop.xlane.xlu0 %1426
    %v1428 = vsel %vm126, %v1424, 0.0
    %1429 = vadd.xlane.f32.xlu0 %v1428
    %v1430 = vpop.xlane.xlu0 %1429
    %v1431 = vmul.f32 %v1427, %v139
    %v1432 = vmul.f32 %v1430, %v139
    %v1433 = vmul.f32 %v1421, %v1421
    %v1434 = vmul.f32 %v1422, %v1422
    %v1435 = vsub.f32 %v1431, %v1433
    %v1436 = vsub.f32 %v1432, %v1434
    %v1437 = vmax.f32 %v1435, 0.0
    %v1438 = vmax.f32 %v1436, 0.0
    %v1439 = vsub.f32 %v1411, %v1421
    %v1440 = vsub.f32 %v1412, %v1422
    %v1441 = vadd.f32 %v1437, 1e-12
    %v1442 = vadd.f32 %v1438, 1e-12
    %v1443 = vrsqrt.pop %v1441
    %v1444 = vmul.f32 %v1443, %v1441
    %v1445 = vmul.f32 %v1444, %v1443
    %v1446 = vmul.f32 0.5, %v1445
    %v1447 = vsub.f32 1.5, %v1446
    %v1448 = vmul.f32 %v1443, %v1447
    %vm1449 = vweird.f32 %v1441
    %vm1450 = vweird.f32 %v1443
    %vm1451 = vmor %vm1449, %vm1450
    %v1452 = vsel %vm1451, %v1443, %v1448
    %v1453 = vrsqrt.pop %v1442
    %v1454 = vmul.f32 %v1453, %v1442
    %v1455 = vmul.f32 %v1454, %v1453
    %v1456 = vmul.f32 0.5, %v1455
    %v1457 = vsub.f32 1.5, %v1456
    %v1458 = vmul.f32 %v1453, %v1457
    %vm1459 = vweird.f32 %v1442
    %vm1460 = vweird.f32 %v1453
    %vm1461 = vmor %vm1459, %vm1460
    %v1462 = vsel %vm1461, %v1453, %v1458
    %v1463 = vmul.f32 %v1439, %v1452
    %v1464 = vmul.f32 %v1440, %v1462
    %v1465 = vperm.slane %v1413, 0
    %v1466 = vmul.f32 %v1463, %v1465
    %v1467 = vmul.f32 %v1464, %v1465
    %v1468 = vperm.slane %v1414, 0
    %v1469 = vadd.f32 %v1466, %v1468
    %v1470 = vadd.f32 %v1467, %v1468
    %v1471 = vld [vmem:[#allocation5 + $0x140] sm:$0xff]
    %v1472 = vld [vmem:[#allocation5 + $0x148] sm:$0xff]
    %v1473 = vld [vmem:[#allocation5 + $0x150] sm:$0xff]
    %v1474 = vld [vmem:[#allocation5 + $0x158] sm:$0xff]
    %v1475 = vld [vmem:[#allocation7 + $0x18] sm:$0x1]
    %v1476 = vperm.slane %v1475, 0
    %v1478 = vsel %vm126, %v1469, 0
    %v1481 = vsel %vm126, %v1470, 0
    %1483 = vmatpush.msra.mxu0 0.0
    %1484 = vmatpush.msra.mxu0 0.0
    %1485 = vmatpush.msra.mxu0 0.0
    %1486 = vmatpush.msra.mxu0 0.0
    %1487 = vmatpush.msra.mxu0 0.0
    %1488 = vmatpush.msra.mxu0 0.0
    %1489 = vmatpush.msra.mxu0 0.0
    %1490 = vmatpush.msra.mxu0 0.0
    %1491 = vmatpush.msra.mxu0 0.0
    %1492 = vmatpush.msra.mxu0 0.0
    %1493 = vmatpush.msra.mxu0 0.0
    %1494 = vmatpush.msra.mxu0 0.0
    %1495 = vmatpush.msra.mxu0 %v1474
    %1496 = vmatpush.msra.mxu0 %v1473
    %1497 = vmatpush.msra.mxu0 %v1472
    %1498 = vmatpush.msra.mxu0 %v1471
    %1499 = vmatmul.f32.gmra.mxu0 %v1478
    %v1500 = vpop.f32.mrf.mxu0
    %v1501 = vadd.f32 %v1476, %v1500
    %1502 = vmatmul.f32.gmra.mxu0 %v1481
    %v1503 = vpop.f32.mrf.mxu0
    %v1504 = vadd.f32 %v1476, %v1503
    %1505 = vdwg.mxu0
    %v1506 = vmul.f32 %v1501, %v1501
    %v1507 = vmul.f32 %v1504, %v1504
    %v1508 = vmul.f32 %v1501, %v1506
    %v1509 = vmul.f32 %v1504, %v1507
    %v1510 = vmul.f32 %v1508, 0.044715
    %v1511 = vmul.f32 %v1509, 0.044715
    %v1512 = vadd.f32 %v1501, %v1510
    %v1513 = vadd.f32 %v1504, %v1511
    %v1514 = vmul.f32 %v1512, 0.7978846
    %v1515 = vmul.f32 %v1513, 0.7978846
    %v1516 = vtanh.pop %v1514
    %v1517 = vtanh.pop %v1515
    %v1518 = vadd.f32 %v1516, 1.0
    %v1519 = vadd.f32 %v1517, 1.0
    %v1520 = vmul.f32 %v1518, 0.5
    %v1521 = vmul.f32 %v1519, 0.5
    %v1522 = vmul.f32 %v1501, %v1520
    %v1523 = vmul.f32 %v1504, %v1521
    %v1524 = vld [vmem:[#allocation5 + $0x160] sm:$0xff]
    %v1525 = vld [vmem:[#allocation5 + $0x168] sm:$0xff]
    %v1526 = vld [vmem:[#allocation5 + $0x170] sm:$0xff]
    %v1527 = vld [vmem:[#allocation5 + $0x178] sm:$0xff]
    %v1528 = vld [vmem:[#allocation5 + $0x180] sm:$0xff]
    %v1529 = vld [vmem:[#allocation5 + $0x188] sm:$0xff]
    %v1530 = vld [vmem:[#allocation5 + $0x190] sm:$0xff]
    %v1531 = vld [vmem:[#allocation5 + $0x198] sm:$0xff]
    %v1532 = vld [vmem:[#allocation7 + $0x19] sm:$0x1]
    %v1533 = vperm.slane %v1532, 0
    %v1535 = vsel %vm823, %v1522, 0
    %v1538 = vsel %vm823, %v1523, 0
    %1540 = vmatpush.msra.mxu0 0.0
    %1541 = vmatpush.msra.mxu0 0.0
    %1542 = vmatpush.msra.mxu0 0.0
    %1543 = vmatpush.msra.mxu0 0.0
    %1544 = vmatpush.msra.mxu0 0.0
    %1545 = vmatpush.msra.mxu0 0.0
    %1546 = vmatpush.msra.mxu0 0.0
    %1547 = vmatpush.msra.mxu0 0.0
    %1548 = vmatpush.msra.mxu0 %v1531
    %1549 = vmatpush.msra.mxu0 %v1530
    %1550 = vmatpush.msra.mxu0 %v1529
    %1551 = vmatpush.msra.mxu0 %v1528
    %1552 = vmatpush.msra.mxu0 %v1527
    %1553 = vmatpush.msra.mxu0 %v1526
    %1554 = vmatpush.msra.mxu0 %v1525
    %1555 = vmatpush.msra.mxu0 %v1524
    %1556 = vmatmul.f32.gmra.mxu0 %v1535
    %v1557 = vpop.f32.mrf.mxu0
    %v1558 = vadd.f32 %v1533, %v1557
    %1559 = vmatmul.f32.gmra.mxu0 %v1538
    %v1560 = vpop.f32.mrf.mxu0
    %v1561 = vadd.f32 %v1533, %v1560
    %1562 = vdwg.mxu0
    %v1563 = vadd.f32 %v1558, %v1469
    %v1564 = vadd.f32 %v1561, %v1470
    %v1565 = vld [vmem:[#allocation7 + $0x1a] sm:$0x1]
    %v1566 = vld [vmem:[#allocation7 + $0x1b] sm:$0x1]
    %v1567 = vsel %vm126, %v1563, 0.0
    %1568 = vadd.xlane.f32.xlu0 %v1567
    %v1569 = vpop.xlane.xlu0 %1568
    %v1570 = vsel %vm126, %v1564, 0.0
    %1571 = vadd.xlane.f32.xlu0 %v1570
    %v1572 = vpop.xlane.xlu0 %1571
    %v1573 = vmul.f32 %v1569, %v139
    %v1574 = vmul.f32 %v1572, %v139
    %v1575 = vmul.f32 %v1563, %v1563
    %v1576 = vmul.f32 %v1564, %v1564
    %v1577 = vsel %vm126, %v1575, 0.0
    %1578 = vadd.xlane.f32.xlu0 %v1577
    %v1579 = vpop.xlane.xlu0 %1578
    %v1580 = vsel %vm126, %v1576, 0.0
    %1581 = vadd.xlane.f32.xlu0 %v1580
    %v1582 = vpop.xlane.xlu0 %1581
    %v1583 = vmul.f32 %v1579, %v139
    %v1584 = vmul.f32 %v1582, %v139
    %v1585 = vmul.f32 %v1573, %v1573
    %v1586 = vmul.f32 %v1574, %v1574
    %v1587 = vsub.f32 %v1583, %v1585
    %v1588 = vsub.f32 %v1584, %v1586
    %v1589 = vmax.f32 %v1587, 0.0
    %v1590 = vmax.f32 %v1588, 0.0
    %v1591 = vsub.f32 %v1563, %v1573
    %v1592 = vsub.f32 %v1564, %v1574
    %v1593 = vadd.f32 %v1589, 1e-12
    %v1594 = vadd.f32 %v1590, 1e-12
    %v1595 = vrsqrt.pop %v1593
    %v1596 = vmul.f32 %v1595, %v1593
    %v1597 = vmul.f32 %v1596, %v1595
    %v1598 = vmul.f32 0.5, %v1597
    %v1599 = vsub.f32 1.5, %v1598
    %v1600 = vmul.f32 %v1595, %v1599
    %vm1601 = vweird.f32 %v1593
    %vm1602 = vweird.f32 %v1595
    %vm1603 = vmor %vm1601, %vm1602
    %v1604 = vsel %vm1603, %v1595, %v1600
    %v1605 = vrsqrt.pop %v1594
    %v1606 = vmul.f32 %v1605, %v1594
    %v1607 = vmul.f32 %v1606, %v1605
    %v1608 = vmul.f32 0.5, %v1607
    %v1609 = vsub.f32 1.5, %v1608
    %v1610 = vmul.f32 %v1605, %v1609
    %vm1611 = vweird.f32 %v1594
    %vm1612 = vweird.f32 %v1605
    %vm1613 = vmor %vm1611, %vm1612
    %v1614 = vsel %vm1613, %v1605, %v1610
    %v1615 = vmul.f32 %v1591, %v1604
    %v1616 = vmul.f32 %v1592, %v1614
    %v1617 = vperm.slane %v1565, 0
    %v1618 = vmul.f32 %v1615, %v1617
    %v1619 = vmul.f32 %v1616, %v1617
    %v1620 = vperm.slane %v1566, 0
    %v1621 = vadd.f32 %v1618, %v1620
    %v1622 = vadd.f32 %v1619, %v1620
    %v1623 = vld [vmem:[#allocation5 + $0x1a0] sm:$0xff]
    %v1624 = vld [vmem:[#allocation5 + $0x1a8] sm:$0xff]
    %v1625 = vld [vmem:[#allocation5 + $0x1b0] sm:$0xff]
    %v1626 = vld [vmem:[#allocation5 + $0x1b8] sm:$0xff]
    %v1627 = vld [vmem:[#allocation7 + $0x1c] sm:$0x1]
    %v1628 = vperm.slane %v1627, 0
    %v1631 = vrot.slane %v1622, 7
    %vm1632 = vcmask 1041409
    %v1633 = vsel %vm1632, %v1631, %v1621
    %v1634 = vsel %vm126, %v1633, 0
    %1636 = vmatpush.msra.mxu0 0.0
    %1637 = vmatpush.msra.mxu0 0.0
    %1638 = vmatpush.msra.mxu0 0.0
    %1639 = vmatpush.msra.mxu0 0.0
    %1640 = vmatpush.msra.mxu0 0.0
    %1641 = vmatpush.msra.mxu0 0.0
    %1642 = vmatpush.msra.mxu0 0.0
    %1643 = vmatpush.msra.mxu0 0.0
    %1644 = vmatpush.msra.mxu0 0.0
    %1645 = vmatpush.msra.mxu0 0.0
    %1646 = vmatpush.msra.mxu0 0.0
    %1647 = vmatpush.msra.mxu0 0.0
    %1648 = vmatpush.msra.mxu0 %v1626
    %1649 = vmatpush.msra.mxu0 %v1625
    %1650 = vmatpush.msra.mxu0 %v1624
    %1651 = vmatpush.msra.mxu0 %v1623
    %1652 = vmatmul.f32.gmra.mxu0 %v1634
    %v1653 = vpop.f32.mrf.mxu0
    %v1654 = vadd.f32 %v1628, %v1653
    %1655 = vdwg.mxu0
    %1656 = vst [vmem:[#allocation8] sm:$0x3] %v1654
    // Predicated region
    $region34: #{amr_classifier_forward.1} parent=1 // pred_check
      _
    $region35: #{amr_classifier_forward.1} parent=1 // pred_check_branch
      %1658 = sbr.rel (0) target = $region37
    $region36: #{amr_classifier_forward.1} parent=1 // pred_region
      %1660 = vsyncadd [#allocation4], 0
      %s1662 = sshll.u32 [#allocation8], 4
      %s1663 = int_to_ptr.vmem [resolvable:$true] %s1662
      %s1664 = sshll.u32 %s5, 4
      %s1665 = int_to_ptr.hbm [resolvable:$true] %s1664
      %1667 = dma.vmem_to_hbm [thread:$0]  %s1663, 32, %s1665, [#allocation4]
    $region37: #{amr_classifier_forward.1} parent=1 // pred_fallthru
      _
    // Predicated region
    $region38: #{amr_classifier_forward.1} parent=1 // pred_check
      _
    $region39: #{amr_classifier_forward.1} parent=1 // pred_check_branch
      %1669 = sbr.rel (0) target = $region41
    $region40: #{amr_classifier_forward.1} parent=1 // pred_region
      %1671 = dma.done [#allocation4], 32
    $region41: #{amr_classifier_forward.1} parent=1 // pred_fallthru
      _
    %1672 = vsyncpa [#allocation3], 1
    %1673 = vsyncpa [#allocation6], 1
    %1674 = vsyncpa [#allocation4], 1

</llo_original>
